<compile_context>
chip_gen: v7x
topology: tpu7x:2x2x1
jax: 0.10.0
libtpu: 0.0.40
codegen_flags: <defaults>
</compile_context>

<pallas_src>
import numpy as np
import jax
import jax.numpy as jnp
from jax import lax
from jax.experimental import pallas as pl
from jax.experimental.pallas import tpu as pltpu

VOCAB = 20
EMB = 16
HID = 32
H2 = HID // 2
NTAGS = 5              # {'B':0,'I':1,'O':2,'<START>':3,'<STOP>':4}
START_IDX = 3
STOP_IDX = 4
T = 8
NEG = -10000.0


# ----------------------------------------------------------------------------
# Fused kernel: one-hot embed + BiLSTM + hidden2tag + Viterbi decode
# ----------------------------------------------------------------------------
def bilstm_crf_kernel(sent_ref, embed_ref, wih_ref, whh_ref, ball_ref,
                      h0_ref, c0_ref, wtagf_ref, wtagb_ref, btag_ref,
                      trans_ref, trans_t_ref,
                      feats_ref, path_ref,
                      hf_s, hb_s):
    T_ = sent_ref.shape[0]
    V = embed_ref.shape[0]
    H = whh_ref.shape[0]           # H2
    G = 4 * H                      # gate width per direction
    N = trans_ref.shape[0]         # NTAGS

    # ---- embedding gather as one-hot matmul (no serialized sublane loads) ---
    onehot = (sent_ref[...] ==
              lax.broadcasted_iota(jnp.int32, (T_, V), 1)).astype(jnp.float32)
    emb = jnp.dot(onehot, embed_ref[...],
                  preferred_element_type=jnp.float32)            # (T, EMB)

    # ---- fused input projection for BOTH directions, bias folded -----------
    xproj = jnp.dot(emb, wih_ref[...],
                    preferred_element_type=jnp.float32) + ball_ref[...]
    # columns [0:G] = forward gates (i,f,o,g), [G:2G] = backward gates

    whh = whh_ref[...]                                           # (H, 2G)
    is_row0 = lax.broadcasted_iota(jnp.int32, (2, G), 0) == 0    # fwd-row mask

    # ---- interleaved fwd/bwd recurrence: one matmul, one sigmoid slab, two
    #      tanh slabs per step (both directions batched into 2 sublanes) -----
    h2 = h0_ref[...]               # (2, H): row0 = h_fwd, row1 = h_bwd
    c2 = c0_ref[...]               # (2, H)
    for k in range(T_):
        tb = T_ - 1 - k
        z = jnp.dot(h2, whh, preferred_element_type=jnp.float32)  # (2, 2G)
        # pick the diagonal (fwd row / bwd row) gate blocks and add the
        # per-direction, per-timestep input projections in one select
        gates = jnp.where(is_row0,
                          z[:, 0:G] + xproj[k:k + 1, 0:G],
                          z[:, G:2 * G] + xproj[tb:tb + 1, G:2 * G])  # (2, G)
        sig = jax.nn.sigmoid(gates[:, 0:3 * H])   # i,f,o of both directions
        g = jnp.tanh(gates[:, 3 * H:G])           # (2, H)
        i = sig[:, 0:H]
        f = sig[:, H:2 * H]
        o = sig[:, 2 * H:3 * H]
        c2 = f * c2 + i * g
        h2 = o * jnp.tanh(c2)                     # (2, H)
        hf_s[k:k + 1, :] = h2[0:1, :]
        hb_s[tb:tb + 1, :] = h2[1:2, :]

    # ---- emission features (off the serial chain) ---------------------------
    feats = (jnp.dot(hf_s[...], wtagf_ref[...],
                     preferred_element_type=jnp.float32)
             + jnp.dot(hb_s[...], wtagb_ref[...],
                       preferred_element_type=jnp.float32)
             + btag_ref[...])                                     # (T, N)
    feats_ref[...] = feats

    # ---- Viterbi decode: alternating-orientation DP (no per-step flip) ------
    trans = trans_ref[...]         # trans[tag, prev]
    trans_t = trans_t_ref[...]     # trans_t[prev, tag]
    iota_r = lax.broadcasted_iota(jnp.int32, (N, N), 0)
    iota_c = lax.broadcasted_iota(jnp.int32, (N, N), 1)
    eye = iota_r == iota_c
    iota_1n = lax.broadcasted_iota(jnp.int32, (1, N), 1)
    iota_n1 = lax.broadcasted_iota(jnp.int32, (N, 1), 0)
    iota_1t = lax.broadcasted_iota(jnp.int32, (1, T_), 1)

    # column-oriented feats for the odd steps, hoisted off the serial DP chain
    fcols = {t: jnp.sum(jnp.where(eye, feats[t:t + 1, :], 0.0),
                        axis=1, keepdims=True)                   # (N, 1)
             for t in range(T_) if t % 2 == 1}

    fv_col = jnp.where(iota_n1 == START_IDX,
                       jnp.zeros((N, 1), jnp.float32),
                       jnp.full((N, 1), NEG, jnp.float32))       # by prev tag
    fv_row = None
    bps = []
    for t in range(T_):
        if t % 2 == 0:
            # fv is a column indexed by prev -> reduce over sublanes -> row
            m = trans_t + fv_col                                 # m[prev, tag]
            vmax = jnp.max(m, axis=0, keepdims=True)             # (1, N)
            bps.append(jnp.min(jnp.where(m == vmax, iota_r, N),
                               axis=0, keepdims=True))           # (1, N)
            fv_row = vmax + feats[t:t + 1, :]
        else:
            # fv is a row indexed by prev -> reduce over lanes -> column
            m = trans + fv_row                                   # m[tag, prev]
            vmax = jnp.max(m, axis=1, keepdims=True)             # (N, 1)
            bps.append(jnp.min(jnp.where(m == vmax, iota_c, N),
                               axis=1, keepdims=True))           # (N, 1)
            fv_col = vmax + fcols[t]

    if (T_ - 1) % 2 == 0:          # DP ended in row orientation
        terminal = fv_row + trans[STOP_IDX:STOP_IDX + 1, :]      # (1, N)
        tmax = jnp.max(terminal, axis=1, keepdims=True)
        best = jnp.min(jnp.where(terminal == tmax, iota_1n, N),
                       axis=1, keepdims=True)                    # (1, 1)
    else:                          # DP ended in column orientation
        terminal = fv_col + trans_t[:, STOP_IDX:STOP_IDX + 1]    # (N, 1)
        tmax = jnp.max(terminal, axis=0, keepdims=True)
        best = jnp.min(jnp.where(terminal == tmax, iota_n1, N),
                       axis=0, keepdims=True)                    # (1, 1)

    # ---- backtrack; assemble one lane-dense (1, T) row, one store -----------
    path_row = jnp.zeros((1, T_), jnp.int32)
    path_row = jnp.where(iota_1t == T_ - 1, best, path_row)
    y = best
    for k in range(1, T_):
        x = T_ - k
        bp = bps[x]
        if x % 2 == 0:             # bp is a (1, N) row
            y = jnp.sum(jnp.where(iota_1n == y, bp, 0),
                        axis=1, keepdims=True)                   # (1, 1)
        else:                      # bp is a (N, 1) column
            y = jnp.sum(jnp.where(iota_n1 == y, bp, 0),
                        axis=0, keepdims=True)                   # (1, 1)
        path_row = jnp.where(iota_1t == x - 1, y, path_row)
    path_ref[...] = path_row


# ----------------------------------------------------------------------------
# Wrapper: derives all fused/packed weight views from the canonical params so
# nothing can silently diverge, then calls one gridless pallas_call.
# ----------------------------------------------------------------------------
def bilstm_crf_forward(sentence, params):
    t_len = sentence.shape[0]

    def cat_gates(w):
        # reorder torch gate order [i, f, g, o] -> [i, f, o, g]
        return jnp.concatenate([w[0], w[1], w[3], w[2]], axis=1)

    wih_all = jnp.concatenate([cat_gates(params["wih_f"]),
                               cat_gates(params["wih_b"])], axis=1)  # (EMB, 8*H2)
    whh_all = jnp.concatenate([cat_gates(params["whh_f"]),
                               cat_gates(params["whh_b"])], axis=1)  # (H2, 8*H2)
    b_all = jnp.concatenate([cat_gates(params["b_f"]),
                             cat_gates(params["b_b"])], axis=1)      # (1, 8*H2)
    h0 = jnp.concatenate([params["h0c0"][0], params["h0c0"][2]], axis=0)  # (2,H2)
    c0 = jnp.concatenate([params["h0c0"][1], params["h0c0"][3]], axis=0)  # (2,H2)
    trans = params["transitions"]
    trans_t = jnp.transpose(trans)            # derived here -> cannot diverge
    sent_col = sentence.astype(jnp.int32).reshape(t_len, 1)

    inputs = (sent_col, params["embed"], wih_all, whh_all, b_all,
              h0, c0, params["wtag_f"], params["wtag_b"], params["btag"],
              trans, trans_t)

    feats, path = pl.pallas_call(
        bilstm_crf_kernel,
        out_shape=(jax.ShapeDtypeStruct((t_len, NTAGS), jnp.float32),
                   jax.ShapeDtypeStruct((1, t_len), jnp.int32)),
        in_specs=[pl.BlockSpec(memory_space=pltpu.MemorySpace.VMEM)
                  for _ in range(len(inputs))],
        out_specs=(pl.BlockSpec(memory_space=pltpu.MemorySpace.VMEM),
                   pl.BlockSpec(memory_space=pltpu.MemorySpace.VMEM)),
        scratch_shapes=[pltpu.VMEM((t_len, H2), jnp.float32),   # fwd hidden
                        pltpu.VMEM((t_len, H2), jnp.float32)],  # bwd hidden
    )(*inputs)
    return feats, path[0]


# ----------------------------------------------------------------------------
# Parameter setup (canonical, PyTorch-layout params only)
# ----------------------------------------------------------------------------
def init_params(key):
    ks = jax.random.split(key, 11)
    k_lstm = 1.0 / np.sqrt(H2)
    k_lin = 1.0 / np.sqrt(HID)

    def unif(k, shape, scale):
        return jax.random.uniform(k, shape, jnp.float32, -scale, scale)

    embed = jax.random.normal(ks[0], (VOCAB, EMB), jnp.float32)
    wih_f = unif(ks[1], (4, EMB, H2), k_lstm)            # torch gate order [i,f,g,o]
    whh_f = unif(ks[2], (4, H2, H2), k_lstm)
    b_f = unif(ks[3], (4, 1, H2), k_lstm)                # bias_ih + bias_hh folded
    wih_b = unif(ks[4], (4, EMB, H2), k_lstm)
    whh_b = unif(ks[5], (4, H2, H2), k_lstm)
    b_b = unif(ks[6], (4, 1, H2), k_lstm)
    h0c0 = jax.random.normal(ks[7], (4, 1, H2), jnp.float32)  # [h0f, c0f, h0b, c0b]
    w_tag = unif(ks[8], (NTAGS, HID), k_lin)             # torch Linear weight (out,in)
    b_tag = unif(ks[9], (NTAGS,), k_lin)
    transitions = jax.random.uniform(ks[10], (NTAGS, NTAGS), jnp.float32, -0.1, 0.1)

    return dict(
        embed=embed,
        wih_f=wih_f, whh_f=whh_f, b_f=b_f,
        wih_b=wih_b, whh_b=whh_b, b_b=b_b,
        h0c0=h0c0,
        wtag_f=jnp.transpose(w_tag[:, :H2]),             # (H2, NTAGS)
        wtag_b=jnp.transpose(w_tag[:, H2:]),             # (H2, NTAGS)
        btag=b_tag.reshape(1, NTAGS),
        transitions=transitions,
    )


# ----------------------------------------------------------------------------
# Pure numpy reference (mirrors the PyTorch code)
# ----------------------------------------------------------------------------
def ref_feats(sentence, p):
    emb = np.asarray(p["embed"])[np.asarray(sentence)]
    wih_f, whh_f, b_f = map(np.asarray, (p["wih_f"], p["whh_f"], p["b_f"]))
    wih_b, whh_b, b_b = map(np.asarray, (p["wih_b"], p["whh_b"], p["b_b"]))
    h0c0 = np.asarray(p["h0c0"])
    wtag_f, wtag_b, btag = map(np.asarray, (p["wtag_f"], p["wtag_b"], p["btag"]))

    def sigmoid(x):
        return 1.0 / (1.0 + np.exp(-x))

    def cell(x, h, c, wih, whh, b):
        g = [x @ wih[k] + h @ whh[k] + b[k] for k in range(4)]
        i, f, gg, o = sigmoid(g[0]), sigmoid(g[1]), np.tanh(g[2]), sigmoid(g[3])
        c = f * c + i * gg
        h = o * np.tanh(c)
        return h, c

    t_len = emb.shape[0]
    hf = np.zeros((t_len, H2), np.float32)
    hb = np.zeros((t_len, H2), np.float32)
    h, c = h0c0[0], h0c0[1]
    for t in range(t_len):
        h, c = cell(emb[t:t + 1], h, c, wih_f, whh_f, b_f)
        hf[t] = h[0]
    h, c = h0c0[2], h0c0[3]
    for t in range(t_len - 1, -1, -1):
        h, c = cell(emb[t:t + 1], h, c, wih_b, whh_b, b_b)
        hb[t] = h[0]
    return hf @ wtag_f + hb @ wtag_b + btag


def ref_viterbi(feats, trans):
    t_len, n = feats.shape
    fv = np.full((1, n), NEG, np.float32)
    fv[0, START_IDX] = 0.0
    pi = np.zeros((t_len, n), np.int64)
    for t in range(t_len):
        vit = np.zeros(n, np.float32)
        for tag in range(n):
            nxt = fv + trans[tag]
            best = int(np.argmax(nxt[0]))
            pi[t, tag] = best
            vit[tag] = nxt[0, best]
        fv = (vit + feats[t]).reshape(1, -1)
    terminal = fv + trans[STOP_IDX]
    best = int(np.argmax(terminal[0]))
    path = [best]
    x, y = t_len - 1, best
    for _ in range(1, t_len):
        path.append(int(pi[x, y]))
        y = int(pi[x, y])
        x -= 1
    return np.array(path[::-1], np.int64)


if __name__ == "__main__":
    key = jax.random.PRNGKey(0)
    kp, ksent = jax.random.split(key)
    params = init_params(kp)
    sentence = jax.random.randint(ksent, (T,), 0, VOCAB, dtype=jnp.int32)

    feats, path = jax.jit(bilstm_crf_forward)(sentence, params)
    feats = jax.block_until_ready(feats)
    path = jax.block_until_ready(path)

    # emission features vs. full PyTorch-equivalent reference
    rf = ref_feats(sentence, params)
    np.testing.assert_allclose(np.asarray(feats), rf, atol=1e-3, rtol=1e-3)
    # Viterbi decode checked exactly against the reference decoder on the
    # kernel's own feats (avoids spurious argmax flips from fp reassociation)
    rp = ref_viterbi(np.asarray(feats, np.float32),
                     np.asarray(params["transitions"], np.float32))
    assert np.array_equal(np.asarray(path, np.int64), rp), (np.asarray(path), rp)
    print("KERNEL_OK")
</pallas_src>

<mosaic_0001>
module attributes {stable_mosaic.version = 11 : i64} {
  func.func @bilstm_crf_kernel(%arg0: memref<8x1xi32, #tpu.memory_space<vmem>>, %arg1: memref<20x16xf32, #tpu.memory_space<vmem>>, %arg2: memref<16x128xf32, #tpu.memory_space<vmem>>, %arg3: memref<16x128xf32, #tpu.memory_space<vmem>>, %arg4: memref<1x128xf32, #tpu.memory_space<vmem>>, %arg5: memref<2x16xf32, #tpu.memory_space<vmem>>, %arg6: memref<2x16xf32, #tpu.memory_space<vmem>>, %arg7: memref<16x5xf32, #tpu.memory_space<vmem>>, %arg8: memref<16x5xf32, #tpu.memory_space<vmem>>, %arg9: memref<1x5xf32, #tpu.memory_space<vmem>>, %arg10: memref<5x5xf32, #tpu.memory_space<vmem>>, %arg11: memref<5x5xf32, #tpu.memory_space<vmem>>, %arg12: memref<8x5xf32, #tpu.memory_space<vmem>>, %arg13: memref<1x8xi32, #tpu.memory_space<vmem>>, %arg14: memref<8x16xf32, #tpu.memory_space<vmem>>, %arg15: memref<8x16xf32, #tpu.memory_space<vmem>>) attributes {dimension_semantics = [], scalar_prefetch = 0 : i64, scratch_operands = 2 : i64, tpu.core_type = #tpu.core_type<tc>} {
    %c0 = arith.constant 0 : index
    %c0_0 = arith.constant 0 : index
    %0 = vector.load %arg0[%c0, %c0_0] : memref<8x1xi32, #tpu.memory_space<vmem>>, vector<8x1xi32>
    %1 = tpu.iota {dimensions = array<i32: 1>} : vector<8x20xi32>
    %2 = vector.broadcast %0 : vector<8x1xi32> to vector<8x20xi32>
    %3 = arith.cmpi eq, %2, %1 : vector<8x20xi32>
    %4 = arith.extui %3 : vector<8x20xi1> to vector<8x20xi32>
    %5 = arith.sitofp %4 : vector<8x20xi32> to vector<8x20xf32>
    %c0_1 = arith.constant 0 : index
    %c0_2 = arith.constant 0 : index
    %6 = vector.load %arg1[%c0_1, %c0_2] : memref<20x16xf32, #tpu.memory_space<vmem>>, vector<20x16xf32>
    %cst = arith.constant dense<0.000000e+00> : vector<8x16xf32>
    %7 = tpu.matmul %5, %6, %cst {dimension_numbers = #tpu.dot_dimension_numbers<[1], [0], [0], [1], [0, 0, 1, 1], [], []>} : vector<8x20xf32>, vector<20x16xf32>, vector<8x16xf32> -> vector<8x16xf32>
    %c0_3 = arith.constant 0 : index
    %c0_4 = arith.constant 0 : index
    %8 = vector.load %arg2[%c0_3, %c0_4] : memref<16x128xf32, #tpu.memory_space<vmem>>, vector<16x128xf32>
    %cst_5 = arith.constant dense<0.000000e+00> : vector<8x128xf32>
    %9 = tpu.matmul %7, %8, %cst_5 {dimension_numbers = #tpu.dot_dimension_numbers<[1], [0], [0], [1], [0, 0, 1, 1], [], []>} : vector<8x16xf32>, vector<16x128xf32>, vector<8x128xf32> -> vector<8x128xf32>
    %c0_6 = arith.constant 0 : index
    %c0_7 = arith.constant 0 : index
    %10 = vector.load %arg4[%c0_6, %c0_7] : memref<1x128xf32, #tpu.memory_space<vmem>>, vector<1x128xf32>
    %11 = vector.broadcast %10 : vector<1x128xf32> to vector<8x128xf32>
    %12 = arith.addf %9, %11 : vector<8x128xf32>
    %c0_8 = arith.constant 0 : index
    %c0_9 = arith.constant 0 : index
    %13 = vector.load %arg3[%c0_8, %c0_9] : memref<16x128xf32, #tpu.memory_space<vmem>>, vector<16x128xf32>
    %14 = tpu.iota {dimensions = array<i32: 0>} : vector<2x64xi32>
    %c0_i32 = arith.constant 0 : i32
    %15 = vector.broadcast %c0_i32 : i32 to vector<2x64xi32>
    %16 = arith.cmpi eq, %14, %15 : vector<2x64xi32>
    %c0_10 = arith.constant 0 : index
    %c0_11 = arith.constant 0 : index
    %17 = vector.load %arg5[%c0_10, %c0_11] : memref<2x16xf32, #tpu.memory_space<vmem>>, vector<2x16xf32>
    %c0_12 = arith.constant 0 : index
    %c0_13 = arith.constant 0 : index
    %18 = vector.load %arg6[%c0_12, %c0_13] : memref<2x16xf32, #tpu.memory_space<vmem>>, vector<2x16xf32>
    %cst_14 = arith.constant dense<0.000000e+00> : vector<2x128xf32>
    %19 = tpu.matmul %17, %13, %cst_14 {dimension_numbers = #tpu.dot_dimension_numbers<[1], [0], [0], [1], [0, 0, 1, 1], [], []>} : vector<2x16xf32>, vector<16x128xf32>, vector<2x128xf32> -> vector<2x128xf32>
    %20 = vector.extract_strided_slice %19 {offsets = [0, 0], sizes = [2, 64], strides = [1, 1]} : vector<2x128xf32> to vector<2x64xf32>
    %21 = vector.extract_strided_slice %12 {offsets = [0, 0], sizes = [1, 64], strides = [1, 1]} : vector<8x128xf32> to vector<1x64xf32>
    %22 = vector.broadcast %21 : vector<1x64xf32> to vector<2x64xf32>
    %23 = arith.addf %20, %22 : vector<2x64xf32>
    %24 = vector.extract_strided_slice %19 {offsets = [0, 64], sizes = [2, 64], strides = [1, 1]} : vector<2x128xf32> to vector<2x64xf32>
    %25 = vector.extract_strided_slice %12 {offsets = [7, 64], sizes = [1, 64], strides = [1, 1]} : vector<8x128xf32> to vector<1x64xf32>
    %26 = vector.broadcast %25 : vector<1x64xf32> to vector<2x64xf32>
    %27 = arith.addf %24, %26 : vector<2x64xf32>
    %28 = arith.select %16, %23, %27 : vector<2x64xi1>, vector<2x64xf32>
    %29 = vector.extract_strided_slice %28 {offsets = [0, 0], sizes = [2, 48], strides = [1, 1]} : vector<2x64xf32> to vector<2x48xf32>
    %30 = arith.negf %29 : vector<2x48xf32>
    %31 = math.exp %30 : vector<2x48xf32>
    %cst_15 = arith.constant 1.000000e+00 : f32
    %32 = vector.broadcast %cst_15 : f32 to vector<2x48xf32>
    %33 = arith.addf %32, %31 : vector<2x48xf32>
    %34 = arith.divf %32, %33 : vector<2x48xf32>
    %35 = vector.extract_strided_slice %28 {offsets = [0, 48], sizes = [2, 16], strides = [1, 1]} : vector<2x64xf32> to vector<2x16xf32>
    %36 = math.tanh %35 : vector<2x16xf32>
    %37 = vector.extract_strided_slice %34 {offsets = [0, 0], sizes = [2, 16], strides = [1, 1]} : vector<2x48xf32> to vector<2x16xf32>
    %38 = vector.extract_strided_slice %34 {offsets = [0, 16], sizes = [2, 16], strides = [1, 1]} : vector<2x48xf32> to vector<2x16xf32>
    %39 = vector.extract_strided_slice %34 {offsets = [0, 32], sizes = [2, 16], strides = [1, 1]} : vector<2x48xf32> to vector<2x16xf32>
    %40 = arith.mulf %38, %18 : vector<2x16xf32>
    %41 = arith.mulf %37, %36 : vector<2x16xf32>
    %42 = arith.addf %40, %41 : vector<2x16xf32>
    %43 = math.tanh %42 : vector<2x16xf32>
    %44 = arith.mulf %39, %43 : vector<2x16xf32>
    %45 = vector.extract_strided_slice %44 {offsets = [0, 0], sizes = [1, 16], strides = [1, 1]} : vector<2x16xf32> to vector<1x16xf32>
    %c0_16 = arith.constant 0 : index
    %c0_17 = arith.constant 0 : index
    %46 = vector.load %arg14[%c0_16, %c0_17] : memref<8x16xf32, #tpu.memory_space<vmem>>, vector<1x16xf32>
    tpu.vector_store %arg14[%c0_16, %c0_17], %45 {strides = array<i32>} : memref<8x16xf32, #tpu.memory_space<vmem>>, vector<1x16xf32>,
    %47 = vector.extract_strided_slice %44 {offsets = [1, 0], sizes = [1, 16], strides = [1, 1]} : vector<2x16xf32> to vector<1x16xf32>
    %c7 = arith.constant 7 : index
    %c0_18 = arith.constant 0 : index
    %48 = vector.load %arg15[%c7, %c0_18] : memref<8x16xf32, #tpu.memory_space<vmem>>, vector<1x16xf32>
    tpu.vector_store %arg15[%c7, %c0_18], %47 {strides = array<i32>} : memref<8x16xf32, #tpu.memory_space<vmem>>, vector<1x16xf32>,
    %cst_19 = arith.constant dense<0.000000e+00> : vector<2x128xf32>
    %49 = tpu.matmul %44, %13, %cst_19 {dimension_numbers = #tpu.dot_dimension_numbers<[1], [0], [0], [1], [0, 0, 1, 1], [], []>} : vector<2x16xf32>, vector<16x128xf32>, vector<2x128xf32> -> vector<2x128xf32>
    %50 = vector.extract_strided_slice %49 {offsets = [0, 0], sizes = [2, 64], strides = [1, 1]} : vector<2x128xf32> to vector<2x64xf32>
    %51 = vector.extract_strided_slice %12 {offsets = [1, 0], sizes = [1, 64], strides = [1, 1]} : vector<8x128xf32> to vector<1x64xf32>
    %52 = vector.broadcast %51 : vector<1x64xf32> to vector<2x64xf32>
    %53 = arith.addf %50, %52 : vector<2x64xf32>
    %54 = vector.extract_strided_slice %49 {offsets = [0, 64], sizes = [2, 64], strides = [1, 1]} : vector<2x128xf32> to vector<2x64xf32>
    %55 = vector.extract_strided_slice %12 {offsets = [6, 64], sizes = [1, 64], strides = [1, 1]} : vector<8x128xf32> to vector<1x64xf32>
    %56 = vector.broadcast %55 : vector<1x64xf32> to vector<2x64xf32>
    %57 = arith.addf %54, %56 : vector<2x64xf32>
    %58 = arith.select %16, %53, %57 : vector<2x64xi1>, vector<2x64xf32>
    %59 = vector.extract_strided_slice %58 {offsets = [0, 0], sizes = [2, 48], strides = [1, 1]} : vector<2x64xf32> to vector<2x48xf32>
    %60 = arith.negf %59 : vector<2x48xf32>
    %61 = math.exp %60 : vector<2x48xf32>
    %cst_20 = arith.constant 1.000000e+00 : f32
    %62 = vector.broadcast %cst_20 : f32 to vector<2x48xf32>
    %63 = arith.addf %62, %61 : vector<2x48xf32>
    %64 = arith.divf %62, %63 : vector<2x48xf32>
    %65 = vector.extract_strided_slice %58 {offsets = [0, 48], sizes = [2, 16], strides = [1, 1]} : vector<2x64xf32> to vector<2x16xf32>
    %66 = math.tanh %65 : vector<2x16xf32>
    %67 = vector.extract_strided_slice %64 {offsets = [0, 0], sizes = [2, 16], strides = [1, 1]} : vector<2x48xf32> to vector<2x16xf32>
    %68 = vector.extract_strided_slice %64 {offsets = [0, 16], sizes = [2, 16], strides = [1, 1]} : vector<2x48xf32> to vector<2x16xf32>
    %69 = vector.extract_strided_slice %64 {offsets = [0, 32], sizes = [2, 16], strides = [1, 1]} : vector<2x48xf32> to vector<2x16xf32>
    %70 = arith.mulf %68, %42 : vector<2x16xf32>
    %71 = arith.mulf %67, %66 : vector<2x16xf32>
    %72 = arith.addf %70, %71 : vector<2x16xf32>
    %73 = math.tanh %72 : vector<2x16xf32>
    %74 = arith.mulf %69, %73 : vector<2x16xf32>
    %75 = vector.extract_strided_slice %74 {offsets = [0, 0], sizes = [1, 16], strides = [1, 1]} : vector<2x16xf32> to vector<1x16xf32>
    %c1 = arith.constant 1 : index
    %c0_21 = arith.constant 0 : index
    %76 = vector.load %arg14[%c1, %c0_21] : memref<8x16xf32, #tpu.memory_space<vmem>>, vector<1x16xf32>
    tpu.vector_store %arg14[%c1, %c0_21], %75 {strides = array<i32>} : memref<8x16xf32, #tpu.memory_space<vmem>>, vector<1x16xf32>,
    %77 = vector.extract_strided_slice %74 {offsets = [1, 0], sizes = [1, 16], strides = [1, 1]} : vector<2x16xf32> to vector<1x16xf32>
    %c6 = arith.constant 6 : index
    %c0_22 = arith.constant 0 : index
    %78 = vector.load %arg15[%c6, %c0_22] : memref<8x16xf32, #tpu.memory_space<vmem>>, vector<1x16xf32>
    tpu.vector_store %arg15[%c6, %c0_22], %77 {strides = array<i32>} : memref<8x16xf32, #tpu.memory_space<vmem>>, vector<1x16xf32>,
    %cst_23 = arith.constant dense<0.000000e+00> : vector<2x128xf32>
    %79 = tpu.matmul %74, %13, %cst_23 {dimension_numbers = #tpu.dot_dimension_numbers<[1], [0], [0], [1], [0, 0, 1, 1], [], []>} : vector<2x16xf32>, vector<16x128xf32>, vector<2x128xf32> -> vector<2x128xf32>
    %80 = vector.extract_strided_slice %79 {offsets = [0, 0], sizes = [2, 64], strides = [1, 1]} : vector<2x128xf32> to vector<2x64xf32>
    %81 = vector.extract_strided_slice %12 {offsets = [2, 0], sizes = [1, 64], strides = [1, 1]} : vector<8x128xf32> to vector<1x64xf32>
    %82 = vector.broadcast %81 : vector<1x64xf32> to vector<2x64xf32>
    %83 = arith.addf %80, %82 : vector<2x64xf32>
    %84 = vector.extract_strided_slice %79 {offsets = [0, 64], sizes = [2, 64], strides = [1, 1]} : vector<2x128xf32> to vector<2x64xf32>
    %85 = vector.extract_strided_slice %12 {offsets = [5, 64], sizes = [1, 64], strides = [1, 1]} : vector<8x128xf32> to vector<1x64xf32>
    %86 = vector.broadcast %85 : vector<1x64xf32> to vector<2x64xf32>
    %87 = arith.addf %84, %86 : vector<2x64xf32>
    %88 = arith.select %16, %83, %87 : vector<2x64xi1>, vector<2x64xf32>
    %89 = vector.extract_strided_slice %88 {offsets = [0, 0], sizes = [2, 48], strides = [1, 1]} : vector<2x64xf32> to vector<2x48xf32>
    %90 = arith.negf %89 : vector<2x48xf32>
    %91 = math.exp %90 : vector<2x48xf32>
    %cst_24 = arith.constant 1.000000e+00 : f32
    %92 = vector.broadcast %cst_24 : f32 to vector<2x48xf32>
    %93 = arith.addf %92, %91 : vector<2x48xf32>
    %94 = arith.divf %92, %93 : vector<2x48xf32>
    %95 = vector.extract_strided_slice %88 {offsets = [0, 48], sizes = [2, 16], strides = [1, 1]} : vector<2x64xf32> to vector<2x16xf32>
    %96 = math.tanh %95 : vector<2x16xf32>
    %97 = vector.extract_strided_slice %94 {offsets = [0, 0], sizes = [2, 16], strides = [1, 1]} : vector<2x48xf32> to vector<2x16xf32>
    %98 = vector.extract_strided_slice %94 {offsets = [0, 16], sizes = [2, 16], strides = [1, 1]} : vector<2x48xf32> to vector<2x16xf32>
    %99 = vector.extract_strided_slice %94 {offsets = [0, 32], sizes = [2, 16], strides = [1, 1]} : vector<2x48xf32> to vector<2x16xf32>
    %100 = arith.mulf %98, %72 : vector<2x16xf32>
    %101 = arith.mulf %97, %96 : vector<2x16xf32>
    %102 = arith.addf %100, %101 : vector<2x16xf32>
    %103 = math.tanh %102 : vector<2x16xf32>
    %104 = arith.mulf %99, %103 : vector<2x16xf32>
    %105 = vector.extract_strided_slice %104 {offsets = [0, 0], sizes = [1, 16], strides = [1, 1]} : vector<2x16xf32> to vector<1x16xf32>
    %c2 = arith.constant 2 : index
    %c0_25 = arith.constant 0 : index
    %106 = vector.load %arg14[%c2, %c0_25] : memref<8x16xf32, #tpu.memory_space<vmem>>, vector<1x16xf32>
    tpu.vector_store %arg14[%c2, %c0_25], %105 {strides = array<i32>} : memref<8x16xf32, #tpu.memory_space<vmem>>, vector<1x16xf32>,
    %107 = vector.extract_strided_slice %104 {offsets = [1, 0], sizes = [1, 16], strides = [1, 1]} : vector<2x16xf32> to vector<1x16xf32>
    %c5 = arith.constant 5 : index
    %c0_26 = arith.constant 0 : index
    %108 = vector.load %arg15[%c5, %c0_26] : memref<8x16xf32, #tpu.memory_space<vmem>>, vector<1x16xf32>
    tpu.vector_store %arg15[%c5, %c0_26], %107 {strides = array<i32>} : memref<8x16xf32, #tpu.memory_space<vmem>>, vector<1x16xf32>,
    %cst_27 = arith.constant dense<0.000000e+00> : vector<2x128xf32>
    %109 = tpu.matmul %104, %13, %cst_27 {dimension_numbers = #tpu.dot_dimension_numbers<[1], [0], [0], [1], [0, 0, 1, 1], [], []>} : vector<2x16xf32>, vector<16x128xf32>, vector<2x128xf32> -> vector<2x128xf32>
    %110 = vector.extract_strided_slice %109 {offsets = [0, 0], sizes = [2, 64], strides = [1, 1]} : vector<2x128xf32> to vector<2x64xf32>
    %111 = vector.extract_strided_slice %12 {offsets = [3, 0], sizes = [1, 64], strides = [1, 1]} : vector<8x128xf32> to vector<1x64xf32>
    %112 = vector.broadcast %111 : vector<1x64xf32> to vector<2x64xf32>
    %113 = arith.addf %110, %112 : vector<2x64xf32>
    %114 = vector.extract_strided_slice %109 {offsets = [0, 64], sizes = [2, 64], strides = [1, 1]} : vector<2x128xf32> to vector<2x64xf32>
    %115 = vector.extract_strided_slice %12 {offsets = [4, 64], sizes = [1, 64], strides = [1, 1]} : vector<8x128xf32> to vector<1x64xf32>
    %116 = vector.broadcast %115 : vector<1x64xf32> to vector<2x64xf32>
    %117 = arith.addf %114, %116 : vector<2x64xf32>
    %118 = arith.select %16, %113, %117 : vector<2x64xi1>, vector<2x64xf32>
    %119 = vector.extract_strided_slice %118 {offsets = [0, 0], sizes = [2, 48], strides = [1, 1]} : vector<2x64xf32> to vector<2x48xf32>
    %120 = arith.negf %119 : vector<2x48xf32>
    %121 = math.exp %120 : vector<2x48xf32>
    %cst_28 = arith.constant 1.000000e+00 : f32
    %122 = vector.broadcast %cst_28 : f32 to vector<2x48xf32>
    %123 = arith.addf %122, %121 : vector<2x48xf32>
    %124 = arith.divf %122, %123 : vector<2x48xf32>
    %125 = vector.extract_strided_slice %118 {offsets = [0, 48], sizes = [2, 16], strides = [1, 1]} : vector<2x64xf32> to vector<2x16xf32>
    %126 = math.tanh %125 : vector<2x16xf32>
    %127 = vector.extract_strided_slice %124 {offsets = [0, 0], sizes = [2, 16], strides = [1, 1]} : vector<2x48xf32> to vector<2x16xf32>
    %128 = vector.extract_strided_slice %124 {offsets = [0, 16], sizes = [2, 16], strides = [1, 1]} : vector<2x48xf32> to vector<2x16xf32>
    %129 = vector.extract_strided_slice %124 {offsets = [0, 32], sizes = [2, 16], strides = [1, 1]} : vector<2x48xf32> to vector<2x16xf32>
    %130 = arith.mulf %128, %102 : vector<2x16xf32>
    %131 = arith.mulf %127, %126 : vector<2x16xf32>
    %132 = arith.addf %130, %131 : vector<2x16xf32>
    %133 = math.tanh %132 : vector<2x16xf32>
    %134 = arith.mulf %129, %133 : vector<2x16xf32>
    %135 = vector.extract_strided_slice %134 {offsets = [0, 0], sizes = [1, 16], strides = [1, 1]} : vector<2x16xf32> to vector<1x16xf32>
    %c3 = arith.constant 3 : index
    %c0_29 = arith.constant 0 : index
    %136 = vector.load %arg14[%c3, %c0_29] : memref<8x16xf32, #tpu.memory_space<vmem>>, vector<1x16xf32>
    tpu.vector_store %arg14[%c3, %c0_29], %135 {strides = array<i32>} : memref<8x16xf32, #tpu.memory_space<vmem>>, vector<1x16xf32>,
    %137 = vector.extract_strided_slice %134 {offsets = [1, 0], sizes = [1, 16], strides = [1, 1]} : vector<2x16xf32> to vector<1x16xf32>
    %c4 = arith.constant 4 : index
    %c0_30 = arith.constant 0 : index
    %138 = vector.load %arg15[%c4, %c0_30] : memref<8x16xf32, #tpu.memory_space<vmem>>, vector<1x16xf32>
    tpu.vector_store %arg15[%c4, %c0_30], %137 {strides = array<i32>} : memref<8x16xf32, #tpu.memory_space<vmem>>, vector<1x16xf32>,
    %cst_31 = arith.constant dense<0.000000e+00> : vector<2x128xf32>
    %139 = tpu.matmul %134, %13, %cst_31 {dimension_numbers = #tpu.dot_dimension_numbers<[1], [0], [0], [1], [0, 0, 1, 1], [], []>} : vector<2x16xf32>, vector<16x128xf32>, vector<2x128xf32> -> vector<2x128xf32>
    %140 = vector.extract_strided_slice %139 {offsets = [0, 0], sizes = [2, 64], strides = [1, 1]} : vector<2x128xf32> to vector<2x64xf32>
    %141 = vector.extract_strided_slice %12 {offsets = [4, 0], sizes = [1, 64], strides = [1, 1]} : vector<8x128xf32> to vector<1x64xf32>
    %142 = vector.broadcast %141 : vector<1x64xf32> to vector<2x64xf32>
    %143 = arith.addf %140, %142 : vector<2x64xf32>
    %144 = vector.extract_strided_slice %139 {offsets = [0, 64], sizes = [2, 64], strides = [1, 1]} : vector<2x128xf32> to vector<2x64xf32>
    %145 = vector.extract_strided_slice %12 {offsets = [3, 64], sizes = [1, 64], strides = [1, 1]} : vector<8x128xf32> to vector<1x64xf32>
    %146 = vector.broadcast %145 : vector<1x64xf32> to vector<2x64xf32>
    %147 = arith.addf %144, %146 : vector<2x64xf32>
    %148 = arith.select %16, %143, %147 : vector<2x64xi1>, vector<2x64xf32>
    %149 = vector.extract_strided_slice %148 {offsets = [0, 0], sizes = [2, 48], strides = [1, 1]} : vector<2x64xf32> to vector<2x48xf32>
    %150 = arith.negf %149 : vector<2x48xf32>
    %151 = math.exp %150 : vector<2x48xf32>
    %cst_32 = arith.constant 1.000000e+00 : f32
    %152 = vector.broadcast %cst_32 : f32 to vector<2x48xf32>
    %153 = arith.addf %152, %151 : vector<2x48xf32>
    %154 = arith.divf %152, %153 : vector<2x48xf32>
    %155 = vector.extract_strided_slice %148 {offsets = [0, 48], sizes = [2, 16], strides = [1, 1]} : vector<2x64xf32> to vector<2x16xf32>
    %156 = math.tanh %155 : vector<2x16xf32>
    %157 = vector.extract_strided_slice %154 {offsets = [0, 0], sizes = [2, 16], strides = [1, 1]} : vector<2x48xf32> to vector<2x16xf32>
    %158 = vector.extract_strided_slice %154 {offsets = [0, 16], sizes = [2, 16], strides = [1, 1]} : vector<2x48xf32> to vector<2x16xf32>
    %159 = vector.extract_strided_slice %154 {offsets = [0, 32], sizes = [2, 16], strides = [1, 1]} : vector<2x48xf32> to vector<2x16xf32>
    %160 = arith.mulf %158, %132 : vector<2x16xf32>
    %161 = arith.mulf %157, %156 : vector<2x16xf32>
    %162 = arith.addf %160, %161 : vector<2x16xf32>
    %163 = math.tanh %162 : vector<2x16xf32>
    %164 = arith.mulf %159, %163 : vector<2x16xf32>
    %165 = vector.extract_strided_slice %164 {offsets = [0, 0], sizes = [1, 16], strides = [1, 1]} : vector<2x16xf32> to vector<1x16xf32>
    %c4_33 = arith.constant 4 : index
    %c0_34 = arith.constant 0 : index
    %166 = vector.load %arg14[%c4_33, %c0_34] : memref<8x16xf32, #tpu.memory_space<vmem>>, vector<1x16xf32>
    tpu.vector_store %arg14[%c4_33, %c0_34], %165 {strides = array<i32>} : memref<8x16xf32, #tpu.memory_space<vmem>>, vector<1x16xf32>,
    %167 = vector.extract_strided_slice %164 {offsets = [1, 0], sizes = [1, 16], strides = [1, 1]} : vector<2x16xf32> to vector<1x16xf32>
    %c3_35 = arith.constant 3 : index
    %c0_36 = arith.constant 0 : index
    %168 = vector.load %arg15[%c3_35, %c0_36] : memref<8x16xf32, #tpu.memory_space<vmem>>, vector<1x16xf32>
    tpu.vector_store %arg15[%c3_35, %c0_36], %167 {strides = array<i32>} : memref<8x16xf32, #tpu.memory_space<vmem>>, vector<1x16xf32>,
    %cst_37 = arith.constant dense<0.000000e+00> : vector<2x128xf32>
    %169 = tpu.matmul %164, %13, %cst_37 {dimension_numbers = #tpu.dot_dimension_numbers<[1], [0], [0], [1], [0, 0, 1, 1], [], []>} : vector<2x16xf32>, vector<16x128xf32>, vector<2x128xf32> -> vector<2x128xf32>
    %170 = vector.extract_strided_slice %169 {offsets = [0, 0], sizes = [2, 64], strides = [1, 1]} : vector<2x128xf32> to vector<2x64xf32>
    %171 = vector.extract_strided_slice %12 {offsets = [5, 0], sizes = [1, 64], strides = [1, 1]} : vector<8x128xf32> to vector<1x64xf32>
    %172 = vector.broadcast %171 : vector<1x64xf32> to vector<2x64xf32>
    %173 = arith.addf %170, %172 : vector<2x64xf32>
    %174 = vector.extract_strided_slice %169 {offsets = [0, 64], sizes = [2, 64], strides = [1, 1]} : vector<2x128xf32> to vector<2x64xf32>
    %175 = vector.extract_strided_slice %12 {offsets = [2, 64], sizes = [1, 64], strides = [1, 1]} : vector<8x128xf32> to vector<1x64xf32>
    %176 = vector.broadcast %175 : vector<1x64xf32> to vector<2x64xf32>
    %177 = arith.addf %174, %176 : vector<2x64xf32>
    %178 = arith.select %16, %173, %177 : vector<2x64xi1>, vector<2x64xf32>
    %179 = vector.extract_strided_slice %178 {offsets = [0, 0], sizes = [2, 48], strides = [1, 1]} : vector<2x64xf32> to vector<2x48xf32>
    %180 = arith.negf %179 : vector<2x48xf32>
    %181 = math.exp %180 : vector<2x48xf32>
    %cst_38 = arith.constant 1.000000e+00 : f32
    %182 = vector.broadcast %cst_38 : f32 to vector<2x48xf32>
    %183 = arith.addf %182, %181 : vector<2x48xf32>
    %184 = arith.divf %182, %183 : vector<2x48xf32>
    %185 = vector.extract_strided_slice %178 {offsets = [0, 48], sizes = [2, 16], strides = [1, 1]} : vector<2x64xf32> to vector<2x16xf32>
    %186 = math.tanh %185 : vector<2x16xf32>
    %187 = vector.extract_strided_slice %184 {offsets = [0, 0], sizes = [2, 16], strides = [1, 1]} : vector<2x48xf32> to vector<2x16xf32>
    %188 = vector.extract_strided_slice %184 {offsets = [0, 16], sizes = [2, 16], strides = [1, 1]} : vector<2x48xf32> to vector<2x16xf32>
    %189 = vector.extract_strided_slice %184 {offsets = [0, 32], sizes = [2, 16], strides = [1, 1]} : vector<2x48xf32> to vector<2x16xf32>
    %190 = arith.mulf %188, %162 : vector<2x16xf32>
    %191 = arith.mulf %187, %186 : vector<2x16xf32>
    %192 = arith.addf %190, %191 : vector<2x16xf32>
    %193 = math.tanh %192 : vector<2x16xf32>
    %194 = arith.mulf %189, %193 : vector<2x16xf32>
    %195 = vector.extract_strided_slice %194 {offsets = [0, 0], sizes = [1, 16], strides = [1, 1]} : vector<2x16xf32> to vector<1x16xf32>
    %c5_39 = arith.constant 5 : index
    %c0_40 = arith.constant 0 : index
    %196 = vector.load %arg14[%c5_39, %c0_40] : memref<8x16xf32, #tpu.memory_space<vmem>>, vector<1x16xf32>
    tpu.vector_store %arg14[%c5_39, %c0_40], %195 {strides = array<i32>} : memref<8x16xf32, #tpu.memory_space<vmem>>, vector<1x16xf32>,
    %197 = vector.extract_strided_slice %194 {offsets = [1, 0], sizes = [1, 16], strides = [1, 1]} : vector<2x16xf32> to vector<1x16xf32>
    %c2_41 = arith.constant 2 : index
    %c0_42 = arith.constant 0 : index
    %198 = vector.load %arg15[%c2_41, %c0_42] : memref<8x16xf32, #tpu.memory_space<vmem>>, vector<1x16xf32>
    tpu.vector_store %arg15[%c2_41, %c0_42], %197 {strides = array<i32>} : memref<8x16xf32, #tpu.memory_space<vmem>>, vector<1x16xf32>,
    %cst_43 = arith.constant dense<0.000000e+00> : vector<2x128xf32>
    %199 = tpu.matmul %194, %13, %cst_43 {dimension_numbers = #tpu.dot_dimension_numbers<[1], [0], [0], [1], [0, 0, 1, 1], [], []>} : vector<2x16xf32>, vector<16x128xf32>, vector<2x128xf32> -> vector<2x128xf32>
    %200 = vector.extract_strided_slice %199 {offsets = [0, 0], sizes = [2, 64], strides = [1, 1]} : vector<2x128xf32> to vector<2x64xf32>
    %201 = vector.extract_strided_slice %12 {offsets = [6, 0], sizes = [1, 64], strides = [1, 1]} : vector<8x128xf32> to vector<1x64xf32>
    %202 = vector.broadcast %201 : vector<1x64xf32> to vector<2x64xf32>
    %203 = arith.addf %200, %202 : vector<2x64xf32>
    %204 = vector.extract_strided_slice %199 {offsets = [0, 64], sizes = [2, 64], strides = [1, 1]} : vector<2x128xf32> to vector<2x64xf32>
    %205 = vector.extract_strided_slice %12 {offsets = [1, 64], sizes = [1, 64], strides = [1, 1]} : vector<8x128xf32> to vector<1x64xf32>
    %206 = vector.broadcast %205 : vector<1x64xf32> to vector<2x64xf32>
    %207 = arith.addf %204, %206 : vector<2x64xf32>
    %208 = arith.select %16, %203, %207 : vector<2x64xi1>, vector<2x64xf32>
    %209 = vector.extract_strided_slice %208 {offsets = [0, 0], sizes = [2, 48], strides = [1, 1]} : vector<2x64xf32> to vector<2x48xf32>
    %210 = arith.negf %209 : vector<2x48xf32>
    %211 = math.exp %210 : vector<2x48xf32>
    %cst_44 = arith.constant 1.000000e+00 : f32
    %212 = vector.broadcast %cst_44 : f32 to vector<2x48xf32>
    %213 = arith.addf %212, %211 : vector<2x48xf32>
    %214 = arith.divf %212, %213 : vector<2x48xf32>
    %215 = vector.extract_strided_slice %208 {offsets = [0, 48], sizes = [2, 16], strides = [1, 1]} : vector<2x64xf32> to vector<2x16xf32>
    %216 = math.tanh %215 : vector<2x16xf32>
    %217 = vector.extract_strided_slice %214 {offsets = [0, 0], sizes = [2, 16], strides = [1, 1]} : vector<2x48xf32> to vector<2x16xf32>
    %218 = vector.extract_strided_slice %214 {offsets = [0, 16], sizes = [2, 16], strides = [1, 1]} : vector<2x48xf32> to vector<2x16xf32>
    %219 = vector.extract_strided_slice %214 {offsets = [0, 32], sizes = [2, 16], strides = [1, 1]} : vector<2x48xf32> to vector<2x16xf32>
    %220 = arith.mulf %218, %192 : vector<2x16xf32>
    %221 = arith.mulf %217, %216 : vector<2x16xf32>
    %222 = arith.addf %220, %221 : vector<2x16xf32>
    %223 = math.tanh %222 : vector<2x16xf32>
    %224 = arith.mulf %219, %223 : vector<2x16xf32>
    %225 = vector.extract_strided_slice %224 {offsets = [0, 0], sizes = [1, 16], strides = [1, 1]} : vector<2x16xf32> to vector<1x16xf32>
    %c6_45 = arith.constant 6 : index
    %c0_46 = arith.constant 0 : index
    %226 = vector.load %arg14[%c6_45, %c0_46] : memref<8x16xf32, #tpu.memory_space<vmem>>, vector<1x16xf32>
    tpu.vector_store %arg14[%c6_45, %c0_46], %225 {strides = array<i32>} : memref<8x16xf32, #tpu.memory_space<vmem>>, vector<1x16xf32>,
    %227 = vector.extract_strided_slice %224 {offsets = [1, 0], sizes = [1, 16], strides = [1, 1]} : vector<2x16xf32> to vector<1x16xf32>
    %c1_47 = arith.constant 1 : index
    %c0_48 = arith.constant 0 : index
    %228 = vector.load %arg15[%c1_47, %c0_48] : memref<8x16xf32, #tpu.memory_space<vmem>>, vector<1x16xf32>
    tpu.vector_store %arg15[%c1_47, %c0_48], %227 {strides = array<i32>} : memref<8x16xf32, #tpu.memory_space<vmem>>, vector<1x16xf32>,
    %cst_49 = arith.constant dense<0.000000e+00> : vector<2x128xf32>
    %229 = tpu.matmul %224, %13, %cst_49 {dimension_numbers = #tpu.dot_dimension_numbers<[1], [0], [0], [1], [0, 0, 1, 1], [], []>} : vector<2x16xf32>, vector<16x128xf32>, vector<2x128xf32> -> vector<2x128xf32>
    %230 = vector.extract_strided_slice %229 {offsets = [0, 0], sizes = [2, 64], strides = [1, 1]} : vector<2x128xf32> to vector<2x64xf32>
    %231 = vector.extract_strided_slice %12 {offsets = [7, 0], sizes = [1, 64], strides = [1, 1]} : vector<8x128xf32> to vector<1x64xf32>
    %232 = vector.broadcast %231 : vector<1x64xf32> to vector<2x64xf32>
    %233 = arith.addf %230, %232 : vector<2x64xf32>
    %234 = vector.extract_strided_slice %229 {offsets = [0, 64], sizes = [2, 64], strides = [1, 1]} : vector<2x128xf32> to vector<2x64xf32>
    %235 = vector.extract_strided_slice %12 {offsets = [0, 64], sizes = [1, 64], strides = [1, 1]} : vector<8x128xf32> to vector<1x64xf32>
    %236 = vector.broadcast %235 : vector<1x64xf32> to vector<2x64xf32>
    %237 = arith.addf %234, %236 : vector<2x64xf32>
    %238 = arith.select %16, %233, %237 : vector<2x64xi1>, vector<2x64xf32>
    %239 = vector.extract_strided_slice %238 {offsets = [0, 0], sizes = [2, 48], strides = [1, 1]} : vector<2x64xf32> to vector<2x48xf32>
    %240 = arith.negf %239 : vector<2x48xf32>
    %241 = math.exp %240 : vector<2x48xf32>
    %cst_50 = arith.constant 1.000000e+00 : f32
    %242 = vector.broadcast %cst_50 : f32 to vector<2x48xf32>
    %243 = arith.addf %242, %241 : vector<2x48xf32>
    %244 = arith.divf %242, %243 : vector<2x48xf32>
    %245 = vector.extract_strided_slice %238 {offsets = [0, 48], sizes = [2, 16], strides = [1, 1]} : vector<2x64xf32> to vector<2x16xf32>
    %246 = math.tanh %245 : vector<2x16xf32>
    %247 = vector.extract_strided_slice %244 {offsets = [0, 0], sizes = [2, 16], strides = [1, 1]} : vector<2x48xf32> to vector<2x16xf32>
    %248 = vector.extract_strided_slice %244 {offsets = [0, 16], sizes = [2, 16], strides = [1, 1]} : vector<2x48xf32> to vector<2x16xf32>
    %249 = vector.extract_strided_slice %244 {offsets = [0, 32], sizes = [2, 16], strides = [1, 1]} : vector<2x48xf32> to vector<2x16xf32>
    %250 = arith.mulf %248, %222 : vector<2x16xf32>
    %251 = arith.mulf %247, %246 : vector<2x16xf32>
    %252 = arith.addf %250, %251 : vector<2x16xf32>
    %253 = math.tanh %252 : vector<2x16xf32>
    %254 = arith.mulf %249, %253 : vector<2x16xf32>
    %255 = vector.extract_strided_slice %254 {offsets = [0, 0], sizes = [1, 16], strides = [1, 1]} : vector<2x16xf32> to vector<1x16xf32>
    %c7_51 = arith.constant 7 : index
    %c0_52 = arith.constant 0 : index
    %256 = vector.load %arg14[%c7_51, %c0_52] : memref<8x16xf32, #tpu.memory_space<vmem>>, vector<1x16xf32>
    tpu.vector_store %arg14[%c7_51, %c0_52], %255 {strides = array<i32>} : memref<8x16xf32, #tpu.memory_space<vmem>>, vector<1x16xf32>,
    %257 = vector.extract_strided_slice %254 {offsets = [1, 0], sizes = [1, 16], strides = [1, 1]} : vector<2x16xf32> to vector<1x16xf32>
    %c0_53 = arith.constant 0 : index
    %c0_54 = arith.constant 0 : index
    %258 = vector.load %arg15[%c0_53, %c0_54] : memref<8x16xf32, #tpu.memory_space<vmem>>, vector<1x16xf32>
    tpu.vector_store %arg15[%c0_53, %c0_54], %257 {strides = array<i32>} : memref<8x16xf32, #tpu.memory_space<vmem>>, vector<1x16xf32>,
    %c0_55 = arith.constant 0 : index
    %c0_56 = arith.constant 0 : index
    %259 = vector.load %arg14[%c0_55, %c0_56] : memref<8x16xf32, #tpu.memory_space<vmem>>, vector<8x16xf32>
    %c0_57 = arith.constant 0 : index
    %c0_58 = arith.constant 0 : index
    %260 = vector.load %arg7[%c0_57, %c0_58] : memref<16x5xf32, #tpu.memory_space<vmem>>, vector<16x5xf32>
    %cst_59 = arith.constant dense<0.000000e+00> : vector<8x5xf32>
    %261 = tpu.matmul %259, %260, %cst_59 {dimension_numbers = #tpu.dot_dimension_numbers<[1], [0], [0], [1], [0, 0, 1, 1], [], []>} : vector<8x16xf32>, vector<16x5xf32>, vector<8x5xf32> -> vector<8x5xf32>
    %c0_60 = arith.constant 0 : index
    %c0_61 = arith.constant 0 : index
    %262 = vector.load %arg15[%c0_60, %c0_61] : memref<8x16xf32, #tpu.memory_space<vmem>>, vector<8x16xf32>
    %c0_62 = arith.constant 0 : index
    %c0_63 = arith.constant 0 : index
    %263 = vector.load %arg8[%c0_62, %c0_63] : memref<16x5xf32, #tpu.memory_space<vmem>>, vector<16x5xf32>
    %cst_64 = arith.constant dense<0.000000e+00> : vector<8x5xf32>
    %264 = tpu.matmul %262, %263, %cst_64 {dimension_numbers = #tpu.dot_dimension_numbers<[1], [0], [0], [1], [0, 0, 1, 1], [], []>} : vector<8x16xf32>, vector<16x5xf32>, vector<8x5xf32> -> vector<8x5xf32>
    %265 = arith.addf %261, %264 : vector<8x5xf32>
    %c0_65 = arith.constant 0 : index
    %c0_66 = arith.constant 0 : index
    %266 = vector.load %arg9[%c0_65, %c0_66] : memref<1x5xf32, #tpu.memory_space<vmem>>, vector<1x5xf32>
    %267 = vector.broadcast %266 : vector<1x5xf32> to vector<8x5xf32>
    %268 = arith.addf %265, %267 : vector<8x5xf32>
    %c0_67 = arith.constant 0 : index
    %c0_68 = arith.constant 0 : index
    %269 = vector.load %arg12[%c0_67, %c0_68] : memref<8x5xf32, #tpu.memory_space<vmem>>, vector<8x5xf32>
    tpu.vector_store %arg12[%c0_67, %c0_68], %268 {strides = array<i32>} : memref<8x5xf32, #tpu.memory_space<vmem>>, vector<8x5xf32>,
    %c0_69 = arith.constant 0 : index
    %c0_70 = arith.constant 0 : index
    %270 = vector.load %arg10[%c0_69, %c0_70] : memref<5x5xf32, #tpu.memory_space<vmem>>, vector<5x5xf32>
    %c0_71 = arith.constant 0 : index
    %c0_72 = arith.constant 0 : index
    %271 = vector.load %arg11[%c0_71, %c0_72] : memref<5x5xf32, #tpu.memory_space<vmem>>, vector<5x5xf32>
    %272 = tpu.iota {dimensions = array<i32: 0>} : vector<5x5xi32>
    %273 = tpu.iota {dimensions = array<i32: 1>} : vector<5x5xi32>
    %274 = arith.cmpi eq, %272, %273 : vector<5x5xi32>
    %275 = tpu.iota {dimensions = array<i32: 1>} : vector<1x5xi32>
    %276 = tpu.iota {dimensions = array<i32: 0>} : vector<5x1xi32>
    %277 = tpu.iota {dimensions = array<i32: 1>} : vector<1x8xi32>
    %278 = vector.extract_strided_slice %268 {offsets = [1, 0], sizes = [1, 5], strides = [1, 1]} : vector<8x5xf32> to vector<1x5xf32>
    %cst_73 = arith.constant 0.000000e+00 : f32
    %279 = vector.shape_cast %278 : vector<1x5xf32> to vector<1x5xf32>
    %280 = vector.broadcast %279 : vector<1x5xf32> to vector<5x5xf32>
    %281 = vector.broadcast %cst_73 : f32 to vector<5x5xf32>
    %282 = arith.select %274, %280, %281 : vector<5x5xi1>, vector<5x5xf32>
    %cst_74 = arith.constant dense<0.000000e+00> : vector<5xf32>
    %283 = vector.multi_reduction <add>, %282, %cst_74 [1] : vector<5x5xf32> to vector<5xf32>
    %284 = vector.shape_cast %283 : vector<5xf32> to vector<5x1xf32>
    %285 = vector.extract_strided_slice %268 {offsets = [3, 0], sizes = [1, 5], strides = [1, 1]} : vector<8x5xf32> to vector<1x5xf32>
    %cst_75 = arith.constant 0.000000e+00 : f32
    %286 = vector.shape_cast %285 : vector<1x5xf32> to vector<1x5xf32>
    %287 = vector.broadcast %286 : vector<1x5xf32> to vector<5x5xf32>
    %288 = vector.broadcast %cst_75 : f32 to vector<5x5xf32>
    %289 = arith.select %274, %287, %288 : vector<5x5xi1>, vector<5x5xf32>
    %cst_76 = arith.constant dense<0.000000e+00> : vector<5xf32>
    %290 = vector.multi_reduction <add>, %289, %cst_76 [1] : vector<5x5xf32> to vector<5xf32>
    %291 = vector.shape_cast %290 : vector<5xf32> to vector<5x1xf32>
    %292 = vector.extract_strided_slice %268 {offsets = [5, 0], sizes = [1, 5], strides = [1, 1]} : vector<8x5xf32> to vector<1x5xf32>
    %cst_77 = arith.constant 0.000000e+00 : f32
    %293 = vector.shape_cast %292 : vector<1x5xf32> to vector<1x5xf32>
    %294 = vector.broadcast %293 : vector<1x5xf32> to vector<5x5xf32>
    %295 = vector.broadcast %cst_77 : f32 to vector<5x5xf32>
    %296 = arith.select %274, %294, %295 : vector<5x5xi1>, vector<5x5xf32>
    %cst_78 = arith.constant dense<0.000000e+00> : vector<5xf32>
    %297 = vector.multi_reduction <add>, %296, %cst_78 [1] : vector<5x5xf32> to vector<5xf32>
    %298 = vector.shape_cast %297 : vector<5xf32> to vector<5x1xf32>
    %299 = vector.extract_strided_slice %268 {offsets = [7, 0], sizes = [1, 5], strides = [1, 1]} : vector<8x5xf32> to vector<1x5xf32>
    %cst_79 = arith.constant 0.000000e+00 : f32
    %300 = vector.shape_cast %299 : vector<1x5xf32> to vector<1x5xf32>
    %301 = vector.broadcast %300 : vector<1x5xf32> to vector<5x5xf32>
    %302 = vector.broadcast %cst_79 : f32 to vector<5x5xf32>
    %303 = arith.select %274, %301, %302 : vector<5x5xi1>, vector<5x5xf32>
    %cst_80 = arith.constant dense<0.000000e+00> : vector<5xf32>
    %304 = vector.multi_reduction <add>, %303, %cst_80 [1] : vector<5x5xf32> to vector<5xf32>
    %305 = vector.shape_cast %304 : vector<5xf32> to vector<5x1xf32>
    %c3_i32 = arith.constant 3 : i32
    %306 = vector.broadcast %c3_i32 : i32 to vector<5x1xi32>
    %307 = arith.cmpi eq, %276, %306 : vector<5x1xi32>
    %cst_81 = arith.constant 0.000000e+00 : f32
    %308 = vector.broadcast %cst_81 : f32 to vector<5x1xf32>
    %cst_82 = arith.constant -1.000000e+04 : f32
    %309 = vector.broadcast %cst_82 : f32 to vector<5x1xf32>
    %310 = arith.select %307, %308, %309 : vector<5x1xi1>, vector<5x1xf32>
    %311 = vector.broadcast %310 : vector<5x1xf32> to vector<5x5xf32>
    %312 = arith.addf %271, %311 : vector<5x5xf32>
    %cst_83 = arith.constant dense<0xFF800000> : vector<5xf32>
    %313 = vector.multi_reduction <maximumf>, %312, %cst_83 [0] : vector<5x5xf32> to vector<5xf32>
    %314 = vector.shape_cast %313 : vector<5xf32> to vector<1x5xf32>
    %315 = vector.extract_strided_slice %268 {offsets = [0, 0], sizes = [1, 5], strides = [1, 1]} : vector<8x5xf32> to vector<1x5xf32>
    %316 = arith.addf %314, %315 : vector<1x5xf32>
    %317 = vector.broadcast %316 : vector<1x5xf32> to vector<5x5xf32>
    %318 = arith.addf %270, %317 : vector<5x5xf32>
    %cst_84 = arith.constant dense<0xFF800000> : vector<5xf32>
    %319 = vector.multi_reduction <maximumf>, %318, %cst_84 [1] : vector<5x5xf32> to vector<5xf32>
    %320 = vector.shape_cast %319 : vector<5xf32> to vector<5x1xf32>
    %321 = vector.broadcast %320 : vector<5x1xf32> to vector<5x5xf32>
    %322 = arith.cmpf oeq, %318, %321 : vector<5x5xf32>
    %c5_i32 = arith.constant 5 : i32
    %323 = vector.broadcast %c5_i32 : i32 to vector<5x5xi32>
    %324 = arith.select %322, %273, %323 : vector<5x5xi1>, vector<5x5xi32>
    %cst_85 = arith.constant dense<2147483647> : vector<5xi32>
    %325 = vector.multi_reduction <minsi>, %324, %cst_85 [1] : vector<5x5xi32> to vector<5xi32>
    %326 = vector.shape_cast %325 : vector<5xi32> to vector<5x1xi32>
    %327 = arith.addf %320, %284 : vector<5x1xf32>
    %328 = vector.broadcast %327 : vector<5x1xf32> to vector<5x5xf32>
    %329 = arith.addf %271, %328 : vector<5x5xf32>
    %cst_86 = arith.constant dense<0xFF800000> : vector<5xf32>
    %330 = vector.multi_reduction <maximumf>, %329, %cst_86 [0] : vector<5x5xf32> to vector<5xf32>
    %331 = vector.shape_cast %330 : vector<5xf32> to vector<1x5xf32>
    %332 = vector.broadcast %331 : vector<1x5xf32> to vector<5x5xf32>
    %333 = arith.cmpf oeq, %329, %332 : vector<5x5xf32>
    %c5_i32_87 = arith.constant 5 : i32
    %334 = vector.broadcast %c5_i32_87 : i32 to vector<5x5xi32>
    %335 = arith.select %333, %272, %334 : vector<5x5xi1>, vector<5x5xi32>
    %cst_88 = arith.constant dense<2147483647> : vector<5xi32>
    %336 = vector.multi_reduction <minsi>, %335, %cst_88 [0] : vector<5x5xi32> to vector<5xi32>
    %337 = vector.shape_cast %336 : vector<5xi32> to vector<1x5xi32>
    %338 = vector.extract_strided_slice %268 {offsets = [2, 0], sizes = [1, 5], strides = [1, 1]} : vector<8x5xf32> to vector<1x5xf32>
    %339 = arith.addf %331, %338 : vector<1x5xf32>
    %340 = vector.broadcast %339 : vector<1x5xf32> to vector<5x5xf32>
    %341 = arith.addf %270, %340 : vector<5x5xf32>
    %cst_89 = arith.constant dense<0xFF800000> : vector<5xf32>
    %342 = vector.multi_reduction <maximumf>, %341, %cst_89 [1] : vector<5x5xf32> to vector<5xf32>
    %343 = vector.shape_cast %342 : vector<5xf32> to vector<5x1xf32>
    %344 = vector.broadcast %343 : vector<5x1xf32> to vector<5x5xf32>
    %345 = arith.cmpf oeq, %341, %344 : vector<5x5xf32>
    %c5_i32_90 = arith.constant 5 : i32
    %346 = vector.broadcast %c5_i32_90 : i32 to vector<5x5xi32>
    %347 = arith.select %345, %273, %346 : vector<5x5xi1>, vector<5x5xi32>
    %cst_91 = arith.constant dense<2147483647> : vector<5xi32>
    %348 = vector.multi_reduction <minsi>, %347, %cst_91 [1] : vector<5x5xi32> to vector<5xi32>
    %349 = vector.shape_cast %348 : vector<5xi32> to vector<5x1xi32>
    %350 = arith.addf %343, %291 : vector<5x1xf32>
    %351 = vector.broadcast %350 : vector<5x1xf32> to vector<5x5xf32>
    %352 = arith.addf %271, %351 : vector<5x5xf32>
    %cst_92 = arith.constant dense<0xFF800000> : vector<5xf32>
    %353 = vector.multi_reduction <maximumf>, %352, %cst_92 [0] : vector<5x5xf32> to vector<5xf32>
    %354 = vector.shape_cast %353 : vector<5xf32> to vector<1x5xf32>
    %355 = vector.broadcast %354 : vector<1x5xf32> to vector<5x5xf32>
    %356 = arith.cmpf oeq, %352, %355 : vector<5x5xf32>
    %c5_i32_93 = arith.constant 5 : i32
    %357 = vector.broadcast %c5_i32_93 : i32 to vector<5x5xi32>
    %358 = arith.select %356, %272, %357 : vector<5x5xi1>, vector<5x5xi32>
    %cst_94 = arith.constant dense<2147483647> : vector<5xi32>
    %359 = vector.multi_reduction <minsi>, %358, %cst_94 [0] : vector<5x5xi32> to vector<5xi32>
    %360 = vector.shape_cast %359 : vector<5xi32> to vector<1x5xi32>
    %361 = vector.extract_strided_slice %268 {offsets = [4, 0], sizes = [1, 5], strides = [1, 1]} : vector<8x5xf32> to vector<1x5xf32>
    %362 = arith.addf %354, %361 : vector<1x5xf32>
    %363 = vector.broadcast %362 : vector<1x5xf32> to vector<5x5xf32>
    %364 = arith.addf %270, %363 : vector<5x5xf32>
    %cst_95 = arith.constant dense<0xFF800000> : vector<5xf32>
    %365 = vector.multi_reduction <maximumf>, %364, %cst_95 [1] : vector<5x5xf32> to vector<5xf32>
    %366 = vector.shape_cast %365 : vector<5xf32> to vector<5x1xf32>
    %367 = vector.broadcast %366 : vector<5x1xf32> to vector<5x5xf32>
    %368 = arith.cmpf oeq, %364, %367 : vector<5x5xf32>
    %c5_i32_96 = arith.constant 5 : i32
    %369 = vector.broadcast %c5_i32_96 : i32 to vector<5x5xi32>
    %370 = arith.select %368, %273, %369 : vector<5x5xi1>, vector<5x5xi32>
    %cst_97 = arith.constant dense<2147483647> : vector<5xi32>
    %371 = vector.multi_reduction <minsi>, %370, %cst_97 [1] : vector<5x5xi32> to vector<5xi32>
    %372 = vector.shape_cast %371 : vector<5xi32> to vector<5x1xi32>
    %373 = arith.addf %366, %298 : vector<5x1xf32>
    %374 = vector.broadcast %373 : vector<5x1xf32> to vector<5x5xf32>
    %375 = arith.addf %271, %374 : vector<5x5xf32>
    %cst_98 = arith.constant dense<0xFF800000> : vector<5xf32>
    %376 = vector.multi_reduction <maximumf>, %375, %cst_98 [0] : vector<5x5xf32> to vector<5xf32>
    %377 = vector.shape_cast %376 : vector<5xf32> to vector<1x5xf32>
    %378 = vector.broadcast %377 : vector<1x5xf32> to vector<5x5xf32>
    %379 = arith.cmpf oeq, %375, %378 : vector<5x5xf32>
    %c5_i32_99 = arith.constant 5 : i32
    %380 = vector.broadcast %c5_i32_99 : i32 to vector<5x5xi32>
    %381 = arith.select %379, %272, %380 : vector<5x5xi1>, vector<5x5xi32>
    %cst_100 = arith.constant dense<2147483647> : vector<5xi32>
    %382 = vector.multi_reduction <minsi>, %381, %cst_100 [0] : vector<5x5xi32> to vector<5xi32>
    %383 = vector.shape_cast %382 : vector<5xi32> to vector<1x5xi32>
    %384 = vector.extract_strided_slice %268 {offsets = [6, 0], sizes = [1, 5], strides = [1, 1]} : vector<8x5xf32> to vector<1x5xf32>
    %385 = arith.addf %377, %384 : vector<1x5xf32>
    %386 = vector.broadcast %385 : vector<1x5xf32> to vector<5x5xf32>
    %387 = arith.addf %270, %386 : vector<5x5xf32>
    %cst_101 = arith.constant dense<0xFF800000> : vector<5xf32>
    %388 = vector.multi_reduction <maximumf>, %387, %cst_101 [1] : vector<5x5xf32> to vector<5xf32>
    %389 = vector.shape_cast %388 : vector<5xf32> to vector<5x1xf32>
    %390 = vector.broadcast %389 : vector<5x1xf32> to vector<5x5xf32>
    %391 = arith.cmpf oeq, %387, %390 : vector<5x5xf32>
    %c5_i32_102 = arith.constant 5 : i32
    %392 = vector.broadcast %c5_i32_102 : i32 to vector<5x5xi32>
    %393 = arith.select %391, %273, %392 : vector<5x5xi1>, vector<5x5xi32>
    %cst_103 = arith.constant dense<2147483647> : vector<5xi32>
    %394 = vector.multi_reduction <minsi>, %393, %cst_103 [1] : vector<5x5xi32> to vector<5xi32>
    %395 = vector.shape_cast %394 : vector<5xi32> to vector<5x1xi32>
    %396 = arith.addf %389, %305 : vector<5x1xf32>
    %397 = vector.extract_strided_slice %271 {offsets = [0, 4], sizes = [5, 1], strides = [1, 1]} : vector<5x5xf32> to vector<5x1xf32>
    %398 = arith.addf %396, %397 : vector<5x1xf32>
    %cst_104 = arith.constant dense<0xFF800000> : vector<1xf32>
    %399 = vector.multi_reduction <maximumf>, %398, %cst_104 [0] : vector<5x1xf32> to vector<1xf32>
    %400 = vector.shape_cast %399 : vector<1xf32> to vector<1x1xf32>
    %401 = vector.broadcast %400 : vector<1x1xf32> to vector<5x1xf32>
    %402 = arith.cmpf oeq, %398, %401 : vector<5x1xf32>
    %c5_i32_105 = arith.constant 5 : i32
    %403 = vector.broadcast %c5_i32_105 : i32 to vector<5x1xi32>
    %404 = arith.select %402, %276, %403 : vector<5x1xi1>, vector<5x1xi32>
    %cst_106 = arith.constant dense<2147483647> : vector<1xi32>
    %405 = vector.multi_reduction <minsi>, %404, %cst_106 [0] : vector<5x1xi32> to vector<1xi32>
    %406 = vector.shape_cast %405 : vector<1xi32> to vector<1x1xi32>
    %c0_i32_107 = arith.constant 0 : i32
    %407 = vector.broadcast %c0_i32_107 : i32 to vector<1x8xi32>
    %c7_i32 = arith.constant 7 : i32
    %408 = vector.broadcast %c7_i32 : i32 to vector<1x8xi32>
    %409 = arith.cmpi eq, %277, %408 : vector<1x8xi32>
    %410 = vector.shape_cast %406 : vector<1x1xi32> to vector<1x1xi32>
    %411 = vector.broadcast %410 : vector<1x1xi32> to vector<1x8xi32>
    %412 = arith.select %409, %411, %407 : vector<1x8xi1>, vector<1x8xi32>
    %413 = vector.broadcast %406 : vector<1x1xi32> to vector<5x1xi32>
    %414 = arith.cmpi eq, %276, %413 : vector<5x1xi32>
    %c0_i32_108 = arith.constant 0 : i32
    %415 = vector.broadcast %c0_i32_108 : i32 to vector<5x1xi32>
    %416 = arith.select %414, %395, %415 : vector<5x1xi1>, vector<5x1xi32>
    %cst_109 = arith.constant dense<0> : vector<1xi32>
    %417 = vector.multi_reduction <add>, %416, %cst_109 [0] : vector<5x1xi32> to vector<1xi32>
    %418 = vector.shape_cast %417 : vector<1xi32> to vector<1x1xi32>
    %c6_i32 = arith.constant 6 : i32
    %419 = vector.broadcast %c6_i32 : i32 to vector<1x8xi32>
    %420 = arith.cmpi eq, %277, %419 : vector<1x8xi32>
    %421 = vector.shape_cast %418 : vector<1x1xi32> to vector<1x1xi32>
    %422 = vector.broadcast %421 : vector<1x1xi32> to vector<1x8xi32>
    %423 = arith.select %420, %422, %412 : vector<1x8xi1>, vector<1x8xi32>
    %424 = vector.broadcast %418 : vector<1x1xi32> to vector<1x5xi32>
    %425 = arith.cmpi eq, %275, %424 : vector<1x5xi32>
    %c0_i32_110 = arith.constant 0 : i32
    %426 = vector.broadcast %c0_i32_110 : i32 to vector<1x5xi32>
    %427 = arith.select %425, %383, %426 : vector<1x5xi1>, vector<1x5xi32>
    %cst_111 = arith.constant dense<0> : vector<1xi32>
    %428 = vector.multi_reduction <add>, %427, %cst_111 [1] : vector<1x5xi32> to vector<1xi32>
    %429 = vector.shape_cast %428 : vector<1xi32> to vector<1x1xi32>
    %c5_i32_112 = arith.constant 5 : i32
    %430 = vector.broadcast %c5_i32_112 : i32 to vector<1x8xi32>
    %431 = arith.cmpi eq, %277, %430 : vector<1x8xi32>
    %432 = vector.shape_cast %429 : vector<1x1xi32> to vector<1x1xi32>
    %433 = vector.broadcast %432 : vector<1x1xi32> to vector<1x8xi32>
    %434 = arith.select %431, %433, %423 : vector<1x8xi1>, vector<1x8xi32>
    %435 = vector.broadcast %429 : vector<1x1xi32> to vector<5x1xi32>
    %436 = arith.cmpi eq, %276, %435 : vector<5x1xi32>
    %c0_i32_113 = arith.constant 0 : i32
    %437 = vector.broadcast %c0_i32_113 : i32 to vector<5x1xi32>
    %438 = arith.select %436, %372, %437 : vector<5x1xi1>, vector<5x1xi32>
    %cst_114 = arith.constant dense<0> : vector<1xi32>
    %439 = vector.multi_reduction <add>, %438, %cst_114 [0] : vector<5x1xi32> to vector<1xi32>
    %440 = vector.shape_cast %439 : vector<1xi32> to vector<1x1xi32>
    %c4_i32 = arith.constant 4 : i32
    %441 = vector.broadcast %c4_i32 : i32 to vector<1x8xi32>
    %442 = arith.cmpi eq, %277, %441 : vector<1x8xi32>
    %443 = vector.shape_cast %440 : vector<1x1xi32> to vector<1x1xi32>
    %444 = vector.broadcast %443 : vector<1x1xi32> to vector<1x8xi32>
    %445 = arith.select %442, %444, %434 : vector<1x8xi1>, vector<1x8xi32>
    %446 = vector.broadcast %440 : vector<1x1xi32> to vector<1x5xi32>
    %447 = arith.cmpi eq, %275, %446 : vector<1x5xi32>
    %c0_i32_115 = arith.constant 0 : i32
    %448 = vector.broadcast %c0_i32_115 : i32 to vector<1x5xi32>
    %449 = arith.select %447, %360, %448 : vector<1x5xi1>, vector<1x5xi32>
    %cst_116 = arith.constant dense<0> : vector<1xi32>
    %450 = vector.multi_reduction <add>, %449, %cst_116 [1] : vector<1x5xi32> to vector<1xi32>
    %451 = vector.shape_cast %450 : vector<1xi32> to vector<1x1xi32>
    %c3_i32_117 = arith.constant 3 : i32
    %452 = vector.broadcast %c3_i32_117 : i32 to vector<1x8xi32>
    %453 = arith.cmpi eq, %277, %452 : vector<1x8xi32>
    %454 = vector.shape_cast %451 : vector<1x1xi32> to vector<1x1xi32>
    %455 = vector.broadcast %454 : vector<1x1xi32> to vector<1x8xi32>
    %456 = arith.select %453, %455, %445 : vector<1x8xi1>, vector<1x8xi32>
    %457 = vector.broadcast %451 : vector<1x1xi32> to vector<5x1xi32>
    %458 = arith.cmpi eq, %276, %457 : vector<5x1xi32>
    %c0_i32_118 = arith.constant 0 : i32
    %459 = vector.broadcast %c0_i32_118 : i32 to vector<5x1xi32>
    %460 = arith.select %458, %349, %459 : vector<5x1xi1>, vector<5x1xi32>
    %cst_119 = arith.constant dense<0> : vector<1xi32>
    %461 = vector.multi_reduction <add>, %460, %cst_119 [0] : vector<5x1xi32> to vector<1xi32>
    %462 = vector.shape_cast %461 : vector<1xi32> to vector<1x1xi32>
    %c2_i32 = arith.constant 2 : i32
    %463 = vector.broadcast %c2_i32 : i32 to vector<1x8xi32>
    %464 = arith.cmpi eq, %277, %463 : vector<1x8xi32>
    %465 = vector.shape_cast %462 : vector<1x1xi32> to vector<1x1xi32>
    %466 = vector.broadcast %465 : vector<1x1xi32> to vector<1x8xi32>
    %467 = arith.select %464, %466, %456 : vector<1x8xi1>, vector<1x8xi32>
    %468 = vector.broadcast %462 : vector<1x1xi32> to vector<1x5xi32>
    %469 = arith.cmpi eq, %275, %468 : vector<1x5xi32>
    %c0_i32_120 = arith.constant 0 : i32
    %470 = vector.broadcast %c0_i32_120 : i32 to vector<1x5xi32>
    %471 = arith.select %469, %337, %470 : vector<1x5xi1>, vector<1x5xi32>
    %cst_121 = arith.constant dense<0> : vector<1xi32>
    %472 = vector.multi_reduction <add>, %471, %cst_121 [1] : vector<1x5xi32> to vector<1xi32>
    %473 = vector.shape_cast %472 : vector<1xi32> to vector<1x1xi32>
    %c1_i32 = arith.constant 1 : i32
    %474 = vector.broadcast %c1_i32 : i32 to vector<1x8xi32>
    %475 = arith.cmpi eq, %277, %474 : vector<1x8xi32>
    %476 = vector.shape_cast %473 : vector<1x1xi32> to vector<1x1xi32>
    %477 = vector.broadcast %476 : vector<1x1xi32> to vector<1x8xi32>
    %478 = arith.select %475, %477, %467 : vector<1x8xi1>, vector<1x8xi32>
    %479 = vector.broadcast %473 : vector<1x1xi32> to vector<5x1xi32>
    %480 = arith.cmpi eq, %276, %479 : vector<5x1xi32>
    %c0_i32_122 = arith.constant 0 : i32
    %481 = vector.broadcast %c0_i32_122 : i32 to vector<5x1xi32>
    %482 = arith.select %480, %326, %481 : vector<5x1xi1>, vector<5x1xi32>
    %cst_123 = arith.constant dense<0> : vector<1xi32>
    %483 = vector.multi_reduction <add>, %482, %cst_123 [0] : vector<5x1xi32> to vector<1xi32>
    %484 = vector.shape_cast %483 : vector<1xi32> to vector<1x1xi32>
    %c0_i32_124 = arith.constant 0 : i32
    %485 = vector.broadcast %c0_i32_124 : i32 to vector<1x8xi32>
    %486 = arith.cmpi eq, %277, %485 : vector<1x8xi32>
    %487 = vector.shape_cast %484 : vector<1x1xi32> to vector<1x1xi32>
    %488 = vector.broadcast %487 : vector<1x1xi32> to vector<1x8xi32>
    %489 = arith.select %486, %488, %478 : vector<1x8xi1>, vector<1x8xi32>
    %c0_125 = arith.constant 0 : index
    %c0_126 = arith.constant 0 : index
    %490 = vector.load %arg13[%c0_125, %c0_126] : memref<1x8xi32, #tpu.memory_space<vmem>>, vector<1x8xi32>
    tpu.vector_store %arg13[%c0_125, %c0_126], %489 {strides = array<i32>} : memref<1x8xi32, #tpu.memory_space<vmem>>, vector<1x8xi32>,
    return
  }
}

</mosaic_0001>

<llo_original>
// kernel: bilstm_crf_forward.1
$region0: #{bilstm_crf_forward.1}
  #allocation0 [shape = 'u32[]', space=smem, size = 0x4, offset = 0x4, fixed_abs, tag = 'smem constant byte address 0x4 - core index']
  #allocation1 [shape = 'u32[144,128]{1,0:T(1,128)}', space=vmem, size = 0x12000, scoped, tag = 'internal scratch']
  #allocation2 [shape = 'f32[8,16]{1,0:T(8,128)}', space=vmem, size = 0x1000, scoped, tag = 'scratch operand']
  #allocation3 [shape = 'f32[8,16]{1,0:T(8,128)}', space=vmem, size = 0x1000, scoped, tag = 'scratch operand']
  %s0 = inlined_call_operand.vmem [shape: s32[8,1], index: 0, kind: input, shape index: {}]
  %s1 = inlined_call_operand.vmem [shape: f32[20,16], index: 1, kind: input, shape index: {}]
  %s2 = inlined_call_operand.vmem [shape: f32[16,128], index: 2, kind: input, shape index: {}]
  %s3 = inlined_call_operand.vmem [shape: f32[16,128], index: 3, kind: input, shape index: {}]
  %s4 = inlined_call_operand.vmem [shape: f32[1,128], index: 4, kind: input, shape index: {}]
  %s5 = inlined_call_operand.vmem [shape: f32[2,16], index: 5, kind: input, shape index: {}]
  %s6 = inlined_call_operand.vmem [shape: f32[2,16], index: 6, kind: input, shape index: {}]
  %s7 = inlined_call_operand.vmem [shape: f32[16,5], index: 7, kind: input, shape index: {}]
  %s8 = inlined_call_operand.vmem [shape: f32[16,5], index: 8, kind: input, shape index: {}]
  %s9 = inlined_call_operand.vmem [shape: f32[1,5], index: 9, kind: input, shape index: {}]
  %s10 = inlined_call_operand.vmem [shape: f32[5,5], index: 10, kind: input, shape index: {}]
  %s11 = inlined_call_operand.vmem [shape: f32[5,5], index: 11, kind: input, shape index: {}]
  %s12 = inlined_call_operand.hbm [shape: f32[8,5], index: 12, kind: output, shape index: {0}]
  %s13 = inlined_call_operand.hbm [shape: s32[1,8], index: 13, kind: output, shape index: {1}]
  %14 = xla_tuple %s12, %s13
  %s15 = sld [smem:[#allocation0]]
  $region66: #{bilstm_crf_forward.1} parent=0
    _
  %s17 = ssub.s32 1, %s15
  %s18 = scalar_select 0, %s17, %s15
  $region1: #{bilstm_crf_forward.1} parent=0
    #allocation4 [shape = 'u8[4096]{0}', space=vmem, size = 0x1000, scoped, tag = 'output window, operand 0, single buffered']
    #allocation5 [shape = 's32[1]{0}', space=sflag, size = 0x4, scoped, tag = 'scoped memory for bilstm_crf_forward.1']
    #allocation6 [shape = 'u8[512]{0}', space=vmem, size = 0x400, scoped, tag = 'output window, operand 1, single buffered']
    #allocation7 [shape = 's32[1]{0}', space=sflag, size = 0x4, scoped, tag = 'scoped memory for bilstm_crf_forward.1']
    %19 = vsyncpa [#allocation5], 0
    %20 = vsyncpa [#allocation7], 0
    // Predicated region
    $region2: #{bilstm_crf_forward.1} parent=1 // pred_check
      _
    $region3: #{bilstm_crf_forward.1} parent=1 // pred_check_branch
      %22 = sbr.rel (0) target = $region5
    $region4: #{bilstm_crf_forward.1} parent=1 // pred_region
      _
    $region5: #{bilstm_crf_forward.1} parent=1 // pred_fallthru
      _
    // Predicated region
    $region6: #{bilstm_crf_forward.1} parent=1 // pred_check
      _
    $region7: #{bilstm_crf_forward.1} parent=1 // pred_check_branch
      %24 = sbr.rel (0) target = $region9
    $region8: #{bilstm_crf_forward.1} parent=1 // pred_region
      _
    $region9: #{bilstm_crf_forward.1} parent=1 // pred_fallthru
      _
    // Predicated region
    $region10: #{bilstm_crf_forward.1} parent=1 // pred_check
      _
    $region11: #{bilstm_crf_forward.1} parent=1 // pred_check_branch
      %26 = sbr.rel (0) target = $region13
    $region12: #{bilstm_crf_forward.1} parent=1 // pred_region
      _
    $region13: #{bilstm_crf_forward.1} parent=1 // pred_fallthru
      _
    // Predicated region
    $region14: #{bilstm_crf_forward.1} parent=1 // pred_check
      _
    $region15: #{bilstm_crf_forward.1} parent=1 // pred_check_branch
      %28 = sbr.rel (0) target = $region17
    $region16: #{bilstm_crf_forward.1} parent=1 // pred_region
      _
    $region17: #{bilstm_crf_forward.1} parent=1 // pred_fallthru
      _
    // Predicated region
    $region18: #{bilstm_crf_forward.1} parent=1 // pred_check
      _
    $region19: #{bilstm_crf_forward.1} parent=1 // pred_check_branch
      %30 = sbr.rel (0) target = $region21
    $region20: #{bilstm_crf_forward.1} parent=1 // pred_region
      _
    $region21: #{bilstm_crf_forward.1} parent=1 // pred_fallthru
      _
    // Predicated region
    $region22: #{bilstm_crf_forward.1} parent=1 // pred_check
      _
    $region23: #{bilstm_crf_forward.1} parent=1 // pred_check_branch
      %32 = sbr.rel (0) target = $region25
    $region24: #{bilstm_crf_forward.1} parent=1 // pred_region
      _
    $region25: #{bilstm_crf_forward.1} parent=1 // pred_fallthru
      _
    // Predicated region
    $region26: #{bilstm_crf_forward.1} parent=1 // pred_check
      _
    $region27: #{bilstm_crf_forward.1} parent=1 // pred_check_branch
      %34 = sbr.rel (0) target = $region29
    $region28: #{bilstm_crf_forward.1} parent=1 // pred_region
      _
    $region29: #{bilstm_crf_forward.1} parent=1 // pred_fallthru
      _
    // Predicated region
    $region30: #{bilstm_crf_forward.1} parent=1 // pred_check
      _
    $region31: #{bilstm_crf_forward.1} parent=1 // pred_check_branch
      %36 = sbr.rel (0) target = $region33
    $region32: #{bilstm_crf_forward.1} parent=1 // pred_region
      _
    $region33: #{bilstm_crf_forward.1} parent=1 // pred_fallthru
      _
    // Predicated region
    $region34: #{bilstm_crf_forward.1} parent=1 // pred_check
      _
    $region35: #{bilstm_crf_forward.1} parent=1 // pred_check_branch
      %38 = sbr.rel (0) target = $region37
    $region36: #{bilstm_crf_forward.1} parent=1 // pred_region
      _
    $region37: #{bilstm_crf_forward.1} parent=1 // pred_fallthru
      _
    // Predicated region
    $region38: #{bilstm_crf_forward.1} parent=1 // pred_check
      _
    $region39: #{bilstm_crf_forward.1} parent=1 // pred_check_branch
      %40 = sbr.rel (0) target = $region41
    $region40: #{bilstm_crf_forward.1} parent=1 // pred_region
      _
    $region41: #{bilstm_crf_forward.1} parent=1 // pred_fallthru
      _
    // Predicated region
    $region42: #{bilstm_crf_forward.1} parent=1 // pred_check
      _
    $region43: #{bilstm_crf_forward.1} parent=1 // pred_check_branch
      %42 = sbr.rel (0) target = $region45
    $region44: #{bilstm_crf_forward.1} parent=1 // pred_region
      _
    $region45: #{bilstm_crf_forward.1} parent=1 // pred_fallthru
      _
    // Predicated region
    $region46: #{bilstm_crf_forward.1} parent=1 // pred_check
      _
    $region47: #{bilstm_crf_forward.1} parent=1 // pred_check_branch
      %44 = sbr.rel (0) target = $region49
    $region48: #{bilstm_crf_forward.1} parent=1 // pred_region
      _
    $region49: #{bilstm_crf_forward.1} parent=1 // pred_fallthru
      _
    %v45 = vld [vmem:[%s0] sm:$0xff]
    %v46 = vlaneseq
    %v47 = vand.u32 %v46, 127
    %48 = vset.pattern.permute.xlu0 0
    %49 = vperm.xlu0 %48, %v45
    %v50 = vpop.permute.xlu0 %49
    %vm51 = vcmp.eq.s32.totalorder %v50, %v47
    %v52 = vsel %vm51, 1, 0
    %v53 = vcvt.s32.f32 %v52
    %v54 = vld [vmem:[%s1] sm:$0xff]
    %v55 = vld [vmem:[%s1 + $0x8] sm:$0xff]
    %v56 = vld [vmem:[%s1 + $0x10] sm:$0xf]
    %vm57 = vcmask 162816
    %v59 = vsel %vm57, %v53, 0
    %vm61 = vcmask 1043456
    %v63 = vsel %vm61, %v56, 0
    %65 = vmatprep.subr.mxu0 0.0
    %66 = vmatpush1.msra.mxu0 %v54
    %67 = vmatprep.subr.mxu0 0.0
    %68 = vmatpush1.msra.mxu0 %v55
    %69 = vmatprep.subr.mxu0 0.0
    %70 = vmatpush1.msra.mxu0 %v63
    %71 = vmatprep.subr.mxu0 0.0
    %72 = vmatpush1.msra.mxu0 0.0
    %73 = vmatprep.subr.mxu0 0.0
    %74 = vmatpush1.msra.mxu0 0.0
    %75 = vmatprep.subr.mxu0 0.0
    %76 = vmatpush1.msra.mxu0 0.0
    %77 = vmatprep.subr.mxu0 0.0
    %78 = vmatpush1.msra.mxu0 0.0
    %79 = vmatprep.subr.mxu0 0.0
    %80 = vmatpush1.msra.mxu0 0.0
    %81 = vmatprep.subr.mxu0 0.0
    %82 = vmatpush1.msra.mxu0 0.0
    %83 = vmatprep.subr.mxu0 0.0
    %84 = vmatpush1.msra.mxu0 0.0
    %85 = vmatprep.subr.mxu0 0.0
    %86 = vmatpush1.msra.mxu0 0.0
    %87 = vmatprep.subr.mxu0 0.0
    %88 = vmatpush1.msra.mxu0 0.0
    %89 = vmatprep.subr.mxu0 0.0
    %90 = vmatpush1.msra.mxu0 0.0
    %91 = vmatprep.subr.mxu0 0.0
    %92 = vmatpush1.msra.mxu0 0.0
    %93 = vmatprep.subr.mxu0 0.0
    %94 = vmatpush1.msra.mxu0 0.0
    %95 = vmatprep.subr.mxu0 0.0
    %96 = vmatpush1.msra.mxu0 0.0
    %97 = vmatprep.subr.mxu0 0.0
    %98 = vmatpush1.msra.mxu0 0.0
    %99 = vmatprep.subr.mxu0 0.0
    %100 = vmatpush1.msra.mxu0 0.0
    %101 = vmatprep.subr.mxu0 0.0
    %102 = vmatpush1.msra.mxu0 0.0
    %103 = vmatprep.subr.mxu0 0.0
    %104 = vmatpush1.msra.mxu0 0.0
    %105 = vmatprep.subr.mxu0 0.0
    %106 = vmatpush1.msra.mxu0 0.0
    %107 = vmatprep.subr.mxu0 0.0
    %108 = vmatpush1.msra.mxu0 0.0
    %109 = vmatprep.subr.mxu0 0.0
    %110 = vmatpush1.msra.mxu0 0.0
    %111 = vmatprep.subr.mxu0 0.0
    %112 = vmatpush1.msra.mxu0 0.0
    %113 = vmatprep.subr.mxu0 0.0
    %114 = vmatpush1.msra.mxu0 0.0
    %115 = vmatprep.subr.mxu0 0.0
    %116 = vmatpush1.msra.mxu0 0.0
    %117 = vmatprep.subr.mxu0 0.0
    %118 = vmatpush1.msra.mxu0 0.0
    %119 = vmatprep.subr.mxu0 0.0
    %120 = vmatpush1.msra.mxu0 0.0
    %121 = vmatprep.subr.mxu0 0.0
    %122 = vmatpush1.msra.mxu0 0.0
    %123 = vmatprep.subr.mxu0 0.0
    %124 = vmatpush1.msra.mxu0 0.0
    %125 = vmatprep.subr.mxu0 0.0
    %126 = vmatpush1.msra.mxu0 0.0
    %127 = vmatprep.subr.mxu0 0.0
    %128 = vmatpush1.msra.mxu0 0.0
    %129 = vmatprep.mubr.f32.mxu0 0.0
    %130 = vmatmul.mubr.f32.gmra.mrb[0].mxu0 %v59
    %v131 = vpop.f32.mrb[0].mxu0
    %v132 = vadd.f32 0.0, %v131
    %v133 = vpop.f32.mrb[0].mxu0
    %134 = vdwg.mxu0
    %v135 = vld [vmem:[%s2] sm:$0xff]
    %v136 = vld [vmem:[%s2 + $0x8] sm:$0xff]
    %v137 = vld [vmem:[%s4] sm:$0x1]
    %v139 = vlaneseq
    %v140 = vshrl.u32 %v139, 7
    %v141 = vsub.s32 0, %v140
    %v142 = vrot.slane %v137, %v141
    %vm144 = vcmask 130048
    %v146 = vsel %vm144, %v132, 0
    %148 = vmatprep.subr.mxu0 0.0
    %149 = vmatpush1.msra.mxu0 %v135
    %150 = vmatprep.subr.mxu0 0.0
    %151 = vmatpush1.msra.mxu0 %v136
    %152 = vmatprep.subr.mxu0 0.0
    %153 = vmatpush1.msra.mxu0 0.0
    %154 = vmatprep.subr.mxu0 0.0
    %155 = vmatpush1.msra.mxu0 0.0
    %156 = vmatprep.subr.mxu0 0.0
    %157 = vmatpush1.msra.mxu0 0.0
    %158 = vmatprep.subr.mxu0 0.0
    %159 = vmatpush1.msra.mxu0 0.0
    %160 = vmatprep.subr.mxu0 0.0
    %161 = vmatpush1.msra.mxu0 0.0
    %162 = vmatprep.subr.mxu0 0.0
    %163 = vmatpush1.msra.mxu0 0.0
    %164 = vmatprep.subr.mxu0 0.0
    %165 = vmatpush1.msra.mxu0 0.0
    %166 = vmatprep.subr.mxu0 0.0
    %167 = vmatpush1.msra.mxu0 0.0
    %168 = vmatprep.subr.mxu0 0.0
    %169 = vmatpush1.msra.mxu0 0.0
    %170 = vmatprep.subr.mxu0 0.0
    %171 = vmatpush1.msra.mxu0 0.0
    %172 = vmatprep.subr.mxu0 0.0
    %173 = vmatpush1.msra.mxu0 0.0
    %174 = vmatprep.subr.mxu0 0.0
    %175 = vmatpush1.msra.mxu0 0.0
    %176 = vmatprep.subr.mxu0 0.0
    %177 = vmatpush1.msra.mxu0 0.0
    %178 = vmatprep.subr.mxu0 0.0
    %179 = vmatpush1.msra.mxu0 0.0
    %180 = vmatprep.subr.mxu0 0.0
    %181 = vmatpush1.msra.mxu0 0.0
    %182 = vmatprep.subr.mxu0 0.0
    %183 = vmatpush1.msra.mxu0 0.0
    %184 = vmatprep.subr.mxu0 0.0
    %185 = vmatpush1.msra.mxu0 0.0
    %186 = vmatprep.subr.mxu0 0.0
    %187 = vmatpush1.msra.mxu0 0.0
    %188 = vmatprep.subr.mxu0 0.0
    %189 = vmatpush1.msra.mxu0 0.0
    %190 = vmatprep.subr.mxu0 0.0
    %191 = vmatpush1.msra.mxu0 0.0
    %192 = vmatprep.subr.mxu0 0.0
    %193 = vmatpush1.msra.mxu0 0.0
    %194 = vmatprep.subr.mxu0 0.0
    %195 = vmatpush1.msra.mxu0 0.0
    %196 = vmatprep.subr.mxu0 0.0
    %197 = vmatpush1.msra.mxu0 0.0
    %198 = vmatprep.subr.mxu0 0.0
    %199 = vmatpush1.msra.mxu0 0.0
    %200 = vmatprep.subr.mxu0 0.0
    %201 = vmatpush1.msra.mxu0 0.0
    %202 = vmatprep.subr.mxu0 0.0
    %203 = vmatpush1.msra.mxu0 0.0
    %204 = vmatprep.subr.mxu0 0.0
    %205 = vmatpush1.msra.mxu0 0.0
    %206 = vmatprep.subr.mxu0 0.0
    %207 = vmatpush1.msra.mxu0 0.0
    %208 = vmatprep.subr.mxu0 0.0
    %209 = vmatpush1.msra.mxu0 0.0
    %210 = vmatprep.subr.mxu0 0.0
    %211 = vmatpush1.msra.mxu0 0.0
    %212 = vmatprep.mubr.f32.mxu0 0.0
    %213 = vmatmul.mubr.f32.gmra.mrb[0].mxu0 %v146
    %v214 = vpop.f32.mrb[0].mxu0
    %v215 = vadd.f32 %v142, %v214
    %v216 = vpop.f32.mrb[0].mxu0
    %217 = vdwg.mxu0
    %v218 = vld [vmem:[%s3] sm:$0xff]
    %v219 = vld [vmem:[%s3 + $0x8] sm:$0xff]
    %v220 = vlaneseq
    %v221 = vshrl.u32 %v220, 7
    %vm222 = vcmp.eq.s32.totalorder %v221, 0
    %v223 = vld [vmem:[%s5] sm:$0x3]
    %v224 = vld [vmem:[%s6] sm:$0x3]
    %v226 = vsel %vm144, %v223, 0
    %228 = vmatprep.subr.mxu0 0.0
    %229 = vmatpush1.msra.mxu0 %v218
    %230 = vmatprep.subr.mxu0 0.0
    %231 = vmatpush1.msra.mxu0 %v219
    %232 = vmatprep.subr.mxu0 0.0
    %233 = vmatpush1.msra.mxu0 0.0
    %234 = vmatprep.subr.mxu0 0.0
    %235 = vmatpush1.msra.mxu0 0.0
    %236 = vmatprep.subr.mxu0 0.0
    %237 = vmatpush1.msra.mxu0 0.0
    %238 = vmatprep.subr.mxu0 0.0
    %239 = vmatpush1.msra.mxu0 0.0
    %240 = vmatprep.subr.mxu0 0.0
    %241 = vmatpush1.msra.mxu0 0.0
    %242 = vmatprep.subr.mxu0 0.0
    %243 = vmatpush1.msra.mxu0 0.0
    %244 = vmatprep.subr.mxu0 0.0
    %245 = vmatpush1.msra.mxu0 0.0
    %246 = vmatprep.subr.mxu0 0.0
    %247 = vmatpush1.msra.mxu0 0.0
    %248 = vmatprep.subr.mxu0 0.0
    %249 = vmatpush1.msra.mxu0 0.0
    %250 = vmatprep.subr.mxu0 0.0
    %251 = vmatpush1.msra.mxu0 0.0
    %252 = vmatprep.subr.mxu0 0.0
    %253 = vmatpush1.msra.mxu0 0.0
    %254 = vmatprep.subr.mxu0 0.0
    %255 = vmatpush1.msra.mxu0 0.0
    %256 = vmatprep.subr.mxu0 0.0
    %257 = vmatpush1.msra.mxu0 0.0
    %258 = vmatprep.subr.mxu0 0.0
    %259 = vmatpush1.msra.mxu0 0.0
    %260 = vmatprep.subr.mxu0 0.0
    %261 = vmatpush1.msra.mxu0 0.0
    %262 = vmatprep.subr.mxu0 0.0
    %263 = vmatpush1.msra.mxu0 0.0
    %264 = vmatprep.subr.mxu0 0.0
    %265 = vmatpush1.msra.mxu0 0.0
    %266 = vmatprep.subr.mxu0 0.0
    %267 = vmatpush1.msra.mxu0 0.0
    %268 = vmatprep.subr.mxu0 0.0
    %269 = vmatpush1.msra.mxu0 0.0
    %270 = vmatprep.subr.mxu0 0.0
    %271 = vmatpush1.msra.mxu0 0.0
    %272 = vmatprep.subr.mxu0 0.0
    %273 = vmatpush1.msra.mxu0 0.0
    %274 = vmatprep.subr.mxu0 0.0
    %275 = vmatpush1.msra.mxu0 0.0
    %276 = vmatprep.subr.mxu0 0.0
    %277 = vmatpush1.msra.mxu0 0.0
    %278 = vmatprep.subr.mxu0 0.0
    %279 = vmatpush1.msra.mxu0 0.0
    %280 = vmatprep.subr.mxu0 0.0
    %281 = vmatpush1.msra.mxu0 0.0
    %282 = vmatprep.subr.mxu0 0.0
    %283 = vmatpush1.msra.mxu0 0.0
    %284 = vmatprep.subr.mxu0 0.0
    %285 = vmatpush1.msra.mxu0 0.0
    %286 = vmatprep.subr.mxu0 0.0
    %287 = vmatpush1.msra.mxu0 0.0
    %288 = vmatprep.subr.mxu0 0.0
    %289 = vmatpush1.msra.mxu0 0.0
    %290 = vmatprep.subr.mxu0 0.0
    %291 = vmatpush1.msra.mxu0 0.0
    %292 = vmatprep.mubr.f32.mxu0 0.0
    %293 = vmatmul.mubr.f32.gmra.mrb[0].mxu0 %v226
    %v294 = vpop.f32.mrb[0].mxu0
    %v295 = vadd.f32 0.0, %v294
    %v296 = vpop.f32.mrb[0].mxu0
    %297 = vdwg.mxu0
    %v298 = vlaneseq
    %v299 = vshrl.u32 %v298, 7
    %v300 = vsub.s32 0, %v299
    %v301 = vrot.slane %v215, %v300
    %v302 = vadd.f32 %v295, %v301
    %v303 = vlaneseq
    %v304 = vshrl.u32 %v303, 7
    %v305 = vsub.s32 7, %v304
    %v306 = vrot.slane %v215, %v305
    %v307 = vadd.f32 %v295, %v306
    %309 = vrot.lane.b32.xlu0 %v307, 64
    %v310 = vpop.permute.xlu0 %309
    %v312 = vsel %vm222, %v302, %v310
    %v313 = vxor.u32 %v312, 2147483648
    %v314 = vmul.f32 %v313, 1.442695
    %v315 = vpow.pop %v314
    %v316 = vadd.f32 %v315, 1.0
    %v317 = vrcp.pop %v316
    %v318 = vmul.f32 1.0, %v317
    %v319 = vtanh.pop %v312
    %321 = vrot.lane.b32.xlu0 %v224, 16
    %v322 = vpop.permute.xlu0 %321
    %v324 = vmul.f32 %v318, %v322
    %326 = vrot.lane.b32.xlu0 %v319, 80
    %v327 = vpop.permute.xlu0 %326
    %v329 = vmul.f32 %v318, %v327
    %331 = vrot.lane.b32.xlu0 %v329, 16
    %v332 = vpop.permute.xlu0 %331
    %v334 = vadd.f32 %v324, %v332
    %v335 = vtanh.pop %v334
    %337 = vrot.lane.b32.xlu0 %v335, 16
    %v338 = vpop.permute.xlu0 %337
    %v340 = vmul.f32 %v318, %v338
    %342 = vrot.lane.b32.xlu0 %v340, 96
    %v343 = vpop.permute.xlu0 %342
    %vm345 = vcmask 122880
    %346 = vst.msk [vmem:[#allocation2] sm:$0x1] %vm345, %v343
    %vm347 = vcmask 123905
    %348 = vst.msk [vmem:[#allocation3 + $0x6] sm:$0x2] %vm347, %v343
    %v349 = vsel %vm144, %v343, 0
    %351 = vmatprep.subr.mxu0 0.0
    %352 = vmatpush1.msra.mxu0 %v218
    %353 = vmatprep.subr.mxu0 0.0
    %354 = vmatpush1.msra.mxu0 %v219
    %355 = vmatprep.subr.mxu0 0.0
    %356 = vmatpush1.msra.mxu0 0.0
    %357 = vmatprep.subr.mxu0 0.0
    %358 = vmatpush1.msra.mxu0 0.0
    %359 = vmatprep.subr.mxu0 0.0
    %360 = vmatpush1.msra.mxu0 0.0
    %361 = vmatprep.subr.mxu0 0.0
    %362 = vmatpush1.msra.mxu0 0.0
    %363 = vmatprep.subr.mxu0 0.0
    %364 = vmatpush1.msra.mxu0 0.0
    %365 = vmatprep.subr.mxu0 0.0
    %366 = vmatpush1.msra.mxu0 0.0
    %367 = vmatprep.subr.mxu0 0.0
    %368 = vmatpush1.msra.mxu0 0.0
    %369 = vmatprep.subr.mxu0 0.0
    %370 = vmatpush1.msra.mxu0 0.0
    %371 = vmatprep.subr.mxu0 0.0
    %372 = vmatpush1.msra.mxu0 0.0
    %373 = vmatprep.subr.mxu0 0.0
    %374 = vmatpush1.msra.mxu0 0.0
    %375 = vmatprep.subr.mxu0 0.0
    %376 = vmatpush1.msra.mxu0 0.0
    %377 = vmatprep.subr.mxu0 0.0
    %378 = vmatpush1.msra.mxu0 0.0
    %379 = vmatprep.subr.mxu0 0.0
    %380 = vmatpush1.msra.mxu0 0.0
    %381 = vmatprep.subr.mxu0 0.0
    %382 = vmatpush1.msra.mxu0 0.0
    %383 = vmatprep.subr.mxu0 0.0
    %384 = vmatpush1.msra.mxu0 0.0
    %385 = vmatprep.subr.mxu0 0.0
    %386 = vmatpush1.msra.mxu0 0.0
    %387 = vmatprep.subr.mxu0 0.0
    %388 = vmatpush1.msra.mxu0 0.0
    %389 = vmatprep.subr.mxu0 0.0
    %390 = vmatpush1.msra.mxu0 0.0
    %391 = vmatprep.subr.mxu0 0.0
    %392 = vmatpush1.msra.mxu0 0.0
    %393 = vmatprep.subr.mxu0 0.0
    %394 = vmatpush1.msra.mxu0 0.0
    %395 = vmatprep.subr.mxu0 0.0
    %396 = vmatpush1.msra.mxu0 0.0
    %397 = vmatprep.subr.mxu0 0.0
    %398 = vmatpush1.msra.mxu0 0.0
    %399 = vmatprep.subr.mxu0 0.0
    %400 = vmatpush1.msra.mxu0 0.0
    %401 = vmatprep.subr.mxu0 0.0
    %402 = vmatpush1.msra.mxu0 0.0
    %403 = vmatprep.subr.mxu0 0.0
    %404 = vmatpush1.msra.mxu0 0.0
    %405 = vmatprep.subr.mxu0 0.0
    %406 = vmatpush1.msra.mxu0 0.0
    %407 = vmatprep.subr.mxu0 0.0
    %408 = vmatpush1.msra.mxu0 0.0
    %409 = vmatprep.subr.mxu0 0.0
    %410 = vmatpush1.msra.mxu0 0.0
    %411 = vmatprep.subr.mxu0 0.0
    %412 = vmatpush1.msra.mxu0 0.0
    %413 = vmatprep.subr.mxu0 0.0
    %414 = vmatpush1.msra.mxu0 0.0
    %415 = vmatprep.mubr.f32.mxu0 0.0
    %416 = vmatmul.mubr.f32.gmra.mrb[0].mxu0 %v349
    %v417 = vpop.f32.mrb[0].mxu0
    %v418 = vadd.f32 0.0, %v417
    %v419 = vpop.f32.mrb[0].mxu0
    %420 = vdwg.mxu0
    %v421 = vlaneseq
    %v422 = vshrl.u32 %v421, 7
    %v423 = vsub.s32 1, %v422
    %v424 = vrot.slane %v215, %v423
    %v425 = vadd.f32 %v418, %v424
    %v426 = vlaneseq
    %v427 = vshrl.u32 %v426, 7
    %v428 = vsub.s32 6, %v427
    %v429 = vrot.slane %v215, %v428
    %v430 = vadd.f32 %v418, %v429
    %432 = vrot.lane.b32.xlu0 %v430, 64
    %v433 = vpop.permute.xlu0 %432
    %v435 = vsel %vm222, %v425, %v433
    %v436 = vxor.u32 %v435, 2147483648
    %v437 = vmul.f32 %v436, 1.442695
    %v438 = vpow.pop %v437
    %v439 = vadd.f32 %v438, 1.0
    %v440 = vrcp.pop %v439
    %v441 = vmul.f32 1.0, %v440
    %v442 = vtanh.pop %v435
    %v443 = vmul.f32 %v441, %v334
    %445 = vrot.lane.b32.xlu0 %v442, 80
    %v446 = vpop.permute.xlu0 %445
    %v448 = vmul.f32 %v441, %v446
    %450 = vrot.lane.b32.xlu0 %v448, 16
    %v451 = vpop.permute.xlu0 %450
    %v453 = vadd.f32 %v443, %v451
    %v454 = vtanh.pop %v453
    %456 = vrot.lane.b32.xlu0 %v454, 16
    %v457 = vpop.permute.xlu0 %456
    %v459 = vmul.f32 %v441, %v457
    %461 = vrot.lane.b32.xlu0 %v459, 96
    %v462 = vpop.permute.xlu0 %461
    %464 = vst.msk [vmem:[#allocation2 + $0x1] sm:$0x1] %vm345, %v462
    %465 = vst.msk [vmem:[#allocation3 + $0x5] sm:$0x2] %vm347, %v462
    %v466 = vsel %vm144, %v462, 0
    %468 = vmatprep.subr.mxu0 0.0
    %469 = vmatpush1.msra.mxu0 %v218
    %470 = vmatprep.subr.mxu0 0.0
    %471 = vmatpush1.msra.mxu0 %v219
    %472 = vmatprep.subr.mxu0 0.0
    %473 = vmatpush1.msra.mxu0 0.0
    %474 = vmatprep.subr.mxu0 0.0
    %475 = vmatpush1.msra.mxu0 0.0
    %476 = vmatprep.subr.mxu0 0.0
    %477 = vmatpush1.msra.mxu0 0.0
    %478 = vmatprep.subr.mxu0 0.0
    %479 = vmatpush1.msra.mxu0 0.0
    %480 = vmatprep.subr.mxu0 0.0
    %481 = vmatpush1.msra.mxu0 0.0
    %482 = vmatprep.subr.mxu0 0.0
    %483 = vmatpush1.msra.mxu0 0.0
    %484 = vmatprep.subr.mxu0 0.0
    %485 = vmatpush1.msra.mxu0 0.0
    %486 = vmatprep.subr.mxu0 0.0
    %487 = vmatpush1.msra.mxu0 0.0
    %488 = vmatprep.subr.mxu0 0.0
    %489 = vmatpush1.msra.mxu0 0.0
    %490 = vmatprep.subr.mxu0 0.0
    %491 = vmatpush1.msra.mxu0 0.0
    %492 = vmatprep.subr.mxu0 0.0
    %493 = vmatpush1.msra.mxu0 0.0
    %494 = vmatprep.subr.mxu0 0.0
    %495 = vmatpush1.msra.mxu0 0.0
    %496 = vmatprep.subr.mxu0 0.0
    %497 = vmatpush1.msra.mxu0 0.0
    %498 = vmatprep.subr.mxu0 0.0
    %499 = vmatpush1.msra.mxu0 0.0
    %500 = vmatprep.subr.mxu0 0.0
    %501 = vmatpush1.msra.mxu0 0.0
    %502 = vmatprep.subr.mxu0 0.0
    %503 = vmatpush1.msra.mxu0 0.0
    %504 = vmatprep.subr.mxu0 0.0
    %505 = vmatpush1.msra.mxu0 0.0
    %506 = vmatprep.subr.mxu0 0.0
    %507 = vmatpush1.msra.mxu0 0.0
    %508 = vmatprep.subr.mxu0 0.0
    %509 = vmatpush1.msra.mxu0 0.0
    %510 = vmatprep.subr.mxu0 0.0
    %511 = vmatpush1.msra.mxu0 0.0
    %512 = vmatprep.subr.mxu0 0.0
    %513 = vmatpush1.msra.mxu0 0.0
    %514 = vmatprep.subr.mxu0 0.0
    %515 = vmatpush1.msra.mxu0 0.0
    %516 = vmatprep.subr.mxu0 0.0
    %517 = vmatpush1.msra.mxu0 0.0
    %518 = vmatprep.subr.mxu0 0.0
    %519 = vmatpush1.msra.mxu0 0.0
    %520 = vmatprep.subr.mxu0 0.0
    %521 = vmatpush1.msra.mxu0 0.0
    %522 = vmatprep.subr.mxu0 0.0
    %523 = vmatpush1.msra.mxu0 0.0
    %524 = vmatprep.subr.mxu0 0.0
    %525 = vmatpush1.msra.mxu0 0.0
    %526 = vmatprep.subr.mxu0 0.0
    %527 = vmatpush1.msra.mxu0 0.0
    %528 = vmatprep.subr.mxu0 0.0
    %529 = vmatpush1.msra.mxu0 0.0
    %530 = vmatprep.subr.mxu0 0.0
    %531 = vmatpush1.msra.mxu0 0.0
    %532 = vmatprep.mubr.f32.mxu0 0.0
    %533 = vmatmul.mubr.f32.gmra.mrb[0].mxu0 %v466
    %v534 = vpop.f32.mrb[0].mxu0
    %v535 = vadd.f32 0.0, %v534
    %v536 = vpop.f32.mrb[0].mxu0
    %537 = vdwg.mxu0
    %v538 = vlaneseq
    %v539 = vshrl.u32 %v538, 7
    %v540 = vsub.s32 2, %v539
    %v541 = vrot.slane %v215, %v540
    %v542 = vadd.f32 %v535, %v541
    %v543 = vlaneseq
    %v544 = vshrl.u32 %v543, 7
    %v545 = vsub.s32 5, %v544
    %v546 = vrot.slane %v215, %v545
    %v547 = vadd.f32 %v535, %v546
    %549 = vrot.lane.b32.xlu0 %v547, 64
    %v550 = vpop.permute.xlu0 %549
    %v552 = vsel %vm222, %v542, %v550
    %v553 = vxor.u32 %v552, 2147483648
    %v554 = vmul.f32 %v553, 1.442695
    %v555 = vpow.pop %v554
    %v556 = vadd.f32 %v555, 1.0
    %v557 = vrcp.pop %v556
    %v558 = vmul.f32 1.0, %v557
    %v559 = vtanh.pop %v552
    %v560 = vmul.f32 %v558, %v453
    %562 = vrot.lane.b32.xlu0 %v559, 80
    %v563 = vpop.permute.xlu0 %562
    %v565 = vmul.f32 %v558, %v563
    %567 = vrot.lane.b32.xlu0 %v565, 16
    %v568 = vpop.permute.xlu0 %567
    %v570 = vadd.f32 %v560, %v568
    %v571 = vtanh.pop %v570
    %573 = vrot.lane.b32.xlu0 %v571, 16
    %v574 = vpop.permute.xlu0 %573
    %v576 = vmul.f32 %v558, %v574
    %578 = vrot.lane.b32.xlu0 %v576, 96
    %v579 = vpop.permute.xlu0 %578
    %581 = vst.msk [vmem:[#allocation2 + $0x2] sm:$0x1] %vm345, %v579
    %582 = vst.msk [vmem:[#allocation3 + $0x4] sm:$0x2] %vm347, %v579
    %v583 = vsel %vm144, %v579, 0
    %585 = vmatprep.subr.mxu0 0.0
    %586 = vmatpush1.msra.mxu0 %v218
    %587 = vmatprep.subr.mxu0 0.0
    %588 = vmatpush1.msra.mxu0 %v219
    %589 = vmatprep.subr.mxu0 0.0
    %590 = vmatpush1.msra.mxu0 0.0
    %591 = vmatprep.subr.mxu0 0.0
    %592 = vmatpush1.msra.mxu0 0.0
    %593 = vmatprep.subr.mxu0 0.0
    %594 = vmatpush1.msra.mxu0 0.0
    %595 = vmatprep.subr.mxu0 0.0
    %596 = vmatpush1.msra.mxu0 0.0
    %597 = vmatprep.subr.mxu0 0.0
    %598 = vmatpush1.msra.mxu0 0.0
    %599 = vmatprep.subr.mxu0 0.0
    %600 = vmatpush1.msra.mxu0 0.0
    %601 = vmatprep.subr.mxu0 0.0
    %602 = vmatpush1.msra.mxu0 0.0
    %603 = vmatprep.subr.mxu0 0.0
    %604 = vmatpush1.msra.mxu0 0.0
    %605 = vmatprep.subr.mxu0 0.0
    %606 = vmatpush1.msra.mxu0 0.0
    %607 = vmatprep.subr.mxu0 0.0
    %608 = vmatpush1.msra.mxu0 0.0
    %609 = vmatprep.subr.mxu0 0.0
    %610 = vmatpush1.msra.mxu0 0.0
    %611 = vmatprep.subr.mxu0 0.0
    %612 = vmatpush1.msra.mxu0 0.0
    %613 = vmatprep.subr.mxu0 0.0
    %614 = vmatpush1.msra.mxu0 0.0
    %615 = vmatprep.subr.mxu0 0.0
    %616 = vmatpush1.msra.mxu0 0.0
    %617 = vmatprep.subr.mxu0 0.0
    %618 = vmatpush1.msra.mxu0 0.0
    %619 = vmatprep.subr.mxu0 0.0
    %620 = vmatpush1.msra.mxu0 0.0
    %621 = vmatprep.subr.mxu0 0.0
    %622 = vmatpush1.msra.mxu0 0.0
    %623 = vmatprep.subr.mxu0 0.0
    %624 = vmatpush1.msra.mxu0 0.0
    %625 = vmatprep.subr.mxu0 0.0
    %626 = vmatpush1.msra.mxu0 0.0
    %627 = vmatprep.subr.mxu0 0.0
    %628 = vmatpush1.msra.mxu0 0.0
    %629 = vmatprep.subr.mxu0 0.0
    %630 = vmatpush1.msra.mxu0 0.0
    %631 = vmatprep.subr.mxu0 0.0
    %632 = vmatpush1.msra.mxu0 0.0
    %633 = vmatprep.subr.mxu0 0.0
    %634 = vmatpush1.msra.mxu0 0.0
    %635 = vmatprep.subr.mxu0 0.0
    %636 = vmatpush1.msra.mxu0 0.0
    %637 = vmatprep.subr.mxu0 0.0
    %638 = vmatpush1.msra.mxu0 0.0
    %639 = vmatprep.subr.mxu0 0.0
    %640 = vmatpush1.msra.mxu0 0.0
    %641 = vmatprep.subr.mxu0 0.0
    %642 = vmatpush1.msra.mxu0 0.0
    %643 = vmatprep.subr.mxu0 0.0
    %644 = vmatpush1.msra.mxu0 0.0
    %645 = vmatprep.subr.mxu0 0.0
    %646 = vmatpush1.msra.mxu0 0.0
    %647 = vmatprep.subr.mxu0 0.0
    %648 = vmatpush1.msra.mxu0 0.0
    %649 = vmatprep.mubr.f32.mxu0 0.0
    %650 = vmatmul.mubr.f32.gmra.mrb[0].mxu0 %v583
    %v651 = vpop.f32.mrb[0].mxu0
    %v652 = vadd.f32 0.0, %v651
    %v653 = vpop.f32.mrb[0].mxu0
    %654 = vdwg.mxu0
    %v655 = vlaneseq
    %v656 = vshrl.u32 %v655, 7
    %v657 = vsub.s32 3, %v656
    %v658 = vrot.slane %v215, %v657
    %v659 = vadd.f32 %v652, %v658
    %v660 = vlaneseq
    %v661 = vshrl.u32 %v660, 7
    %v662 = vsub.s32 4, %v661
    %v663 = vrot.slane %v215, %v662
    %v664 = vadd.f32 %v652, %v663
    %666 = vrot.lane.b32.xlu0 %v664, 64
    %v667 = vpop.permute.xlu0 %666
    %v669 = vsel %vm222, %v659, %v667
    %v670 = vxor.u32 %v669, 2147483648
    %v671 = vmul.f32 %v670, 1.442695
    %v672 = vpow.pop %v671
    %v673 = vadd.f32 %v672, 1.0
    %v674 = vrcp.pop %v673
    %v675 = vmul.f32 1.0, %v674
    %v676 = vtanh.pop %v669
    %v677 = vmul.f32 %v675, %v570
    %679 = vrot.lane.b32.xlu0 %v676, 80
    %v680 = vpop.permute.xlu0 %679
    %v682 = vmul.f32 %v675, %v680
    %684 = vrot.lane.b32.xlu0 %v682, 16
    %v685 = vpop.permute.xlu0 %684
    %v687 = vadd.f32 %v677, %v685
    %v688 = vtanh.pop %v687
    %690 = vrot.lane.b32.xlu0 %v688, 16
    %v691 = vpop.permute.xlu0 %690
    %v693 = vmul.f32 %v675, %v691
    %695 = vrot.lane.b32.xlu0 %v693, 96
    %v696 = vpop.permute.xlu0 %695
    %698 = vst.msk [vmem:[#allocation2 + $0x3] sm:$0x1] %vm345, %v696
    %699 = vst.msk [vmem:[#allocation3 + $0x3] sm:$0x2] %vm347, %v696
    %v700 = vsel %vm144, %v696, 0
    %702 = vmatprep.subr.mxu0 0.0
    %703 = vmatpush1.msra.mxu0 %v218
    %704 = vmatprep.subr.mxu0 0.0
    %705 = vmatpush1.msra.mxu0 %v219
    %706 = vmatprep.subr.mxu0 0.0
    %707 = vmatpush1.msra.mxu0 0.0
    %708 = vmatprep.subr.mxu0 0.0
    %709 = vmatpush1.msra.mxu0 0.0
    %710 = vmatprep.subr.mxu0 0.0
    %711 = vmatpush1.msra.mxu0 0.0
    %712 = vmatprep.subr.mxu0 0.0
    %713 = vmatpush1.msra.mxu0 0.0
    %714 = vmatprep.subr.mxu0 0.0
    %715 = vmatpush1.msra.mxu0 0.0
    %716 = vmatprep.subr.mxu0 0.0
    %717 = vmatpush1.msra.mxu0 0.0
    %718 = vmatprep.subr.mxu0 0.0
    %719 = vmatpush1.msra.mxu0 0.0
    %720 = vmatprep.subr.mxu0 0.0
    %721 = vmatpush1.msra.mxu0 0.0
    %722 = vmatprep.subr.mxu0 0.0
    %723 = vmatpush1.msra.mxu0 0.0
    %724 = vmatprep.subr.mxu0 0.0
    %725 = vmatpush1.msra.mxu0 0.0
    %726 = vmatprep.subr.mxu0 0.0
    %727 = vmatpush1.msra.mxu0 0.0
    %728 = vmatprep.subr.mxu0 0.0
    %729 = vmatpush1.msra.mxu0 0.0
    %730 = vmatprep.subr.mxu0 0.0
    %731 = vmatpush1.msra.mxu0 0.0
    %732 = vmatprep.subr.mxu0 0.0
    %733 = vmatpush1.msra.mxu0 0.0
    %734 = vmatprep.subr.mxu0 0.0
    %735 = vmatpush1.msra.mxu0 0.0
    %736 = vmatprep.subr.mxu0 0.0
    %737 = vmatpush1.msra.mxu0 0.0
    %738 = vmatprep.subr.mxu0 0.0
    %739 = vmatpush1.msra.mxu0 0.0
    %740 = vmatprep.subr.mxu0 0.0
    %741 = vmatpush1.msra.mxu0 0.0
    %742 = vmatprep.subr.mxu0 0.0
    %743 = vmatpush1.msra.mxu0 0.0
    %744 = vmatprep.subr.mxu0 0.0
    %745 = vmatpush1.msra.mxu0 0.0
    %746 = vmatprep.subr.mxu0 0.0
    %747 = vmatpush1.msra.mxu0 0.0
    %748 = vmatprep.subr.mxu0 0.0
    %749 = vmatpush1.msra.mxu0 0.0
    %750 = vmatprep.subr.mxu0 0.0
    %751 = vmatpush1.msra.mxu0 0.0
    %752 = vmatprep.subr.mxu0 0.0
    %753 = vmatpush1.msra.mxu0 0.0
    %754 = vmatprep.subr.mxu0 0.0
    %755 = vmatpush1.msra.mxu0 0.0
    %756 = vmatprep.subr.mxu0 0.0
    %757 = vmatpush1.msra.mxu0 0.0
    %758 = vmatprep.subr.mxu0 0.0
    %759 = vmatpush1.msra.mxu0 0.0
    %760 = vmatprep.subr.mxu0 0.0
    %761 = vmatpush1.msra.mxu0 0.0
    %762 = vmatprep.subr.mxu0 0.0
    %763 = vmatpush1.msra.mxu0 0.0
    %764 = vmatprep.subr.mxu0 0.0
    %765 = vmatpush1.msra.mxu0 0.0
    %766 = vmatprep.mubr.f32.mxu0 0.0
    %767 = vmatmul.mubr.f32.gmra.mrb[0].mxu0 %v700
    %v768 = vpop.f32.mrb[0].mxu0
    %v769 = vadd.f32 0.0, %v768
    %v770 = vpop.f32.mrb[0].mxu0
    %771 = vdwg.mxu0
    %v772 = vadd.f32 %v769, %v663
    %v773 = vadd.f32 %v769, %v658
    %775 = vrot.lane.b32.xlu0 %v773, 64
    %v776 = vpop.permute.xlu0 %775
    %v778 = vsel %vm222, %v772, %v776
    %v779 = vxor.u32 %v778, 2147483648
    %v780 = vmul.f32 %v779, 1.442695
    %v781 = vpow.pop %v780
    %v782 = vadd.f32 %v781, 1.0
    %v783 = vrcp.pop %v782
    %v784 = vmul.f32 1.0, %v783
    %v785 = vtanh.pop %v778
    %v786 = vmul.f32 %v784, %v687
    %788 = vrot.lane.b32.xlu0 %v785, 80
    %v789 = vpop.permute.xlu0 %788
    %v791 = vmul.f32 %v784, %v789
    %793 = vrot.lane.b32.xlu0 %v791, 16
    %v794 = vpop.permute.xlu0 %793
    %v796 = vadd.f32 %v786, %v794
    %v797 = vtanh.pop %v796
    %799 = vrot.lane.b32.xlu0 %v797, 16
    %v800 = vpop.permute.xlu0 %799
    %v802 = vmul.f32 %v784, %v800
    %804 = vrot.lane.b32.xlu0 %v802, 96
    %v805 = vpop.permute.xlu0 %804
    %807 = vst.msk [vmem:[#allocation2 + $0x4] sm:$0x1] %vm345, %v805
    %808 = vst.msk [vmem:[#allocation3 + $0x2] sm:$0x2] %vm347, %v805
    %v809 = vsel %vm144, %v805, 0
    %811 = vmatprep.subr.mxu0 0.0
    %812 = vmatpush1.msra.mxu0 %v218
    %813 = vmatprep.subr.mxu0 0.0
    %814 = vmatpush1.msra.mxu0 %v219
    %815 = vmatprep.subr.mxu0 0.0
    %816 = vmatpush1.msra.mxu0 0.0
    %817 = vmatprep.subr.mxu0 0.0
    %818 = vmatpush1.msra.mxu0 0.0
    %819 = vmatprep.subr.mxu0 0.0
    %820 = vmatpush1.msra.mxu0 0.0
    %821 = vmatprep.subr.mxu0 0.0
    %822 = vmatpush1.msra.mxu0 0.0
    %823 = vmatprep.subr.mxu0 0.0
    %824 = vmatpush1.msra.mxu0 0.0
    %825 = vmatprep.subr.mxu0 0.0
    %826 = vmatpush1.msra.mxu0 0.0
    %827 = vmatprep.subr.mxu0 0.0
    %828 = vmatpush1.msra.mxu0 0.0
    %829 = vmatprep.subr.mxu0 0.0
    %830 = vmatpush1.msra.mxu0 0.0
    %831 = vmatprep.subr.mxu0 0.0
    %832 = vmatpush1.msra.mxu0 0.0
    %833 = vmatprep.subr.mxu0 0.0
    %834 = vmatpush1.msra.mxu0 0.0
    %835 = vmatprep.subr.mxu0 0.0
    %836 = vmatpush1.msra.mxu0 0.0
    %837 = vmatprep.subr.mxu0 0.0
    %838 = vmatpush1.msra.mxu0 0.0
    %839 = vmatprep.subr.mxu0 0.0
    %840 = vmatpush1.msra.mxu0 0.0
    %841 = vmatprep.subr.mxu0 0.0
    %842 = vmatpush1.msra.mxu0 0.0
    %843 = vmatprep.subr.mxu0 0.0
    %844 = vmatpush1.msra.mxu0 0.0
    %845 = vmatprep.subr.mxu0 0.0
    %846 = vmatpush1.msra.mxu0 0.0
    %847 = vmatprep.subr.mxu0 0.0
    %848 = vmatpush1.msra.mxu0 0.0
    %849 = vmatprep.subr.mxu0 0.0
    %850 = vmatpush1.msra.mxu0 0.0
    %851 = vmatprep.subr.mxu0 0.0
    %852 = vmatpush1.msra.mxu0 0.0
    %853 = vmatprep.subr.mxu0 0.0
    %854 = vmatpush1.msra.mxu0 0.0
    %855 = vmatprep.subr.mxu0 0.0
    %856 = vmatpush1.msra.mxu0 0.0
    %857 = vmatprep.subr.mxu0 0.0
    %858 = vmatpush1.msra.mxu0 0.0
    %859 = vmatprep.subr.mxu0 0.0
    %860 = vmatpush1.msra.mxu0 0.0
    %861 = vmatprep.subr.mxu0 0.0
    %862 = vmatpush1.msra.mxu0 0.0
    %863 = vmatprep.subr.mxu0 0.0
    %864 = vmatpush1.msra.mxu0 0.0
    %865 = vmatprep.subr.mxu0 0.0
    %866 = vmatpush1.msra.mxu0 0.0
    %867 = vmatprep.subr.mxu0 0.0
    %868 = vmatpush1.msra.mxu0 0.0
    %869 = vmatprep.subr.mxu0 0.0
    %870 = vmatpush1.msra.mxu0 0.0
    %871 = vmatprep.subr.mxu0 0.0
    %872 = vmatpush1.msra.mxu0 0.0
    %873 = vmatprep.subr.mxu0 0.0
    %874 = vmatpush1.msra.mxu0 0.0
    %875 = vmatprep.mubr.f32.mxu0 0.0
    %876 = vmatmul.mubr.f32.gmra.mrb[0].mxu0 %v809
    %v877 = vpop.f32.mrb[0].mxu0
    %v878 = vadd.f32 0.0, %v877
    %v879 = vpop.f32.mrb[0].mxu0
    %880 = vdwg.mxu0
    %v881 = vadd.f32 %v878, %v546
    %v882 = vadd.f32 %v878, %v541
    %884 = vrot.lane.b32.xlu0 %v882, 64
    %v885 = vpop.permute.xlu0 %884
    %v887 = vsel %vm222, %v881, %v885
    %v888 = vxor.u32 %v887, 2147483648
    %v889 = vmul.f32 %v888, 1.442695
    %v890 = vpow.pop %v889
    %v891 = vadd.f32 %v890, 1.0
    %v892 = vrcp.pop %v891
    %v893 = vmul.f32 1.0, %v892
    %v894 = vtanh.pop %v887
    %v895 = vmul.f32 %v893, %v796
    %897 = vrot.lane.b32.xlu0 %v894, 80
    %v898 = vpop.permute.xlu0 %897
    %v900 = vmul.f32 %v893, %v898
    %902 = vrot.lane.b32.xlu0 %v900, 16
    %v903 = vpop.permute.xlu0 %902
    %v905 = vadd.f32 %v895, %v903
    %v906 = vtanh.pop %v905
    %908 = vrot.lane.b32.xlu0 %v906, 16
    %v909 = vpop.permute.xlu0 %908
    %v911 = vmul.f32 %v893, %v909
    %913 = vrot.lane.b32.xlu0 %v911, 96
    %v914 = vpop.permute.xlu0 %913
    %916 = vst.msk [vmem:[#allocation2 + $0x5] sm:$0x1] %vm345, %v914
    %917 = vst.msk [vmem:[#allocation3 + $0x1] sm:$0x2] %vm347, %v914
    %v918 = vsel %vm144, %v914, 0
    %920 = vmatprep.subr.mxu0 0.0
    %921 = vmatpush1.msra.mxu0 %v218
    %922 = vmatprep.subr.mxu0 0.0
    %923 = vmatpush1.msra.mxu0 %v219
    %924 = vmatprep.subr.mxu0 0.0
    %925 = vmatpush1.msra.mxu0 0.0
    %926 = vmatprep.subr.mxu0 0.0
    %927 = vmatpush1.msra.mxu0 0.0
    %928 = vmatprep.subr.mxu0 0.0
    %929 = vmatpush1.msra.mxu0 0.0
    %930 = vmatprep.subr.mxu0 0.0
    %931 = vmatpush1.msra.mxu0 0.0
    %932 = vmatprep.subr.mxu0 0.0
    %933 = vmatpush1.msra.mxu0 0.0
    %934 = vmatprep.subr.mxu0 0.0
    %935 = vmatpush1.msra.mxu0 0.0
    %936 = vmatprep.subr.mxu0 0.0
    %937 = vmatpush1.msra.mxu0 0.0
    %938 = vmatprep.subr.mxu0 0.0
    %939 = vmatpush1.msra.mxu0 0.0
    %940 = vmatprep.subr.mxu0 0.0
    %941 = vmatpush1.msra.mxu0 0.0
    %942 = vmatprep.subr.mxu0 0.0
    %943 = vmatpush1.msra.mxu0 0.0
    %944 = vmatprep.subr.mxu0 0.0
    %945 = vmatpush1.msra.mxu0 0.0
    %946 = vmatprep.subr.mxu0 0.0
    %947 = vmatpush1.msra.mxu0 0.0
    %948 = vmatprep.subr.mxu0 0.0
    %949 = vmatpush1.msra.mxu0 0.0
    %950 = vmatprep.subr.mxu0 0.0
    %951 = vmatpush1.msra.mxu0 0.0
    %952 = vmatprep.subr.mxu0 0.0
    %953 = vmatpush1.msra.mxu0 0.0
    %954 = vmatprep.subr.mxu0 0.0
    %955 = vmatpush1.msra.mxu0 0.0
    %956 = vmatprep.subr.mxu0 0.0
    %957 = vmatpush1.msra.mxu0 0.0
    %958 = vmatprep.subr.mxu0 0.0
    %959 = vmatpush1.msra.mxu0 0.0
    %960 = vmatprep.subr.mxu0 0.0
    %961 = vmatpush1.msra.mxu0 0.0
    %962 = vmatprep.subr.mxu0 0.0
    %963 = vmatpush1.msra.mxu0 0.0
    %964 = vmatprep.subr.mxu0 0.0
    %965 = vmatpush1.msra.mxu0 0.0
    %966 = vmatprep.subr.mxu0 0.0
    %967 = vmatpush1.msra.mxu0 0.0
    %968 = vmatprep.subr.mxu0 0.0
    %969 = vmatpush1.msra.mxu0 0.0
    %970 = vmatprep.subr.mxu0 0.0
    %971 = vmatpush1.msra.mxu0 0.0
    %972 = vmatprep.subr.mxu0 0.0
    %973 = vmatpush1.msra.mxu0 0.0
    %974 = vmatprep.subr.mxu0 0.0
    %975 = vmatpush1.msra.mxu0 0.0
    %976 = vmatprep.subr.mxu0 0.0
    %977 = vmatpush1.msra.mxu0 0.0
    %978 = vmatprep.subr.mxu0 0.0
    %979 = vmatpush1.msra.mxu0 0.0
    %980 = vmatprep.subr.mxu0 0.0
    %981 = vmatpush1.msra.mxu0 0.0
    %982 = vmatprep.subr.mxu0 0.0
    %983 = vmatpush1.msra.mxu0 0.0
    %984 = vmatprep.mubr.f32.mxu0 0.0
    %985 = vmatmul.mubr.f32.gmra.mrb[0].mxu0 %v918
    %v986 = vpop.f32.mrb[0].mxu0
    %v987 = vadd.f32 0.0, %v986
    %v988 = vpop.f32.mrb[0].mxu0
    %989 = vdwg.mxu0
    %v990 = vadd.f32 %v987, %v429
    %v991 = vadd.f32 %v987, %v424
    %993 = vrot.lane.b32.xlu0 %v991, 64
    %v994 = vpop.permute.xlu0 %993
    %v996 = vsel %vm222, %v990, %v994
    %v997 = vxor.u32 %v996, 2147483648
    %v998 = vmul.f32 %v997, 1.442695
    %v999 = vpow.pop %v998
    %v1000 = vadd.f32 %v999, 1.0
    %v1001 = vrcp.pop %v1000
    %v1002 = vmul.f32 1.0, %v1001
    %v1003 = vtanh.pop %v996
    %v1004 = vmul.f32 %v1002, %v905
    %1006 = vrot.lane.b32.xlu0 %v1003, 80
    %v1007 = vpop.permute.xlu0 %1006
    %v1009 = vmul.f32 %v1002, %v1007
    %1011 = vrot.lane.b32.xlu0 %v1009, 16
    %v1012 = vpop.permute.xlu0 %1011
    %v1014 = vadd.f32 %v1004, %v1012
    %v1015 = vtanh.pop %v1014
    %1017 = vrot.lane.b32.xlu0 %v1015, 16
    %v1018 = vpop.permute.xlu0 %1017
    %v1020 = vmul.f32 %v1002, %v1018
    %1022 = vrot.lane.b32.xlu0 %v1020, 96
    %v1023 = vpop.permute.xlu0 %1022
    %1025 = vst.msk [vmem:[#allocation2 + $0x6] sm:$0x1] %vm345, %v1023
    %1026 = vst.msk [vmem:[#allocation3] sm:$0x2] %vm347, %v1023
    %v1027 = vsel %vm144, %v1023, 0
    %1029 = vmatprep.subr.mxu0 0.0
    %1030 = vmatpush1.msra.mxu0 %v218
    %1031 = vmatprep.subr.mxu0 0.0
    %1032 = vmatpush1.msra.mxu0 %v219
    %1033 = vmatprep.subr.mxu0 0.0
    %1034 = vmatpush1.msra.mxu0 0.0
    %1035 = vmatprep.subr.mxu0 0.0
    %1036 = vmatpush1.msra.mxu0 0.0
    %1037 = vmatprep.subr.mxu0 0.0
    %1038 = vmatpush1.msra.mxu0 0.0
    %1039 = vmatprep.subr.mxu0 0.0
    %1040 = vmatpush1.msra.mxu0 0.0
    %1041 = vmatprep.subr.mxu0 0.0
    %1042 = vmatpush1.msra.mxu0 0.0
    %1043 = vmatprep.subr.mxu0 0.0
    %1044 = vmatpush1.msra.mxu0 0.0
    %1045 = vmatprep.subr.mxu0 0.0
    %1046 = vmatpush1.msra.mxu0 0.0
    %1047 = vmatprep.subr.mxu0 0.0
    %1048 = vmatpush1.msra.mxu0 0.0
    %1049 = vmatprep.subr.mxu0 0.0
    %1050 = vmatpush1.msra.mxu0 0.0
    %1051 = vmatprep.subr.mxu0 0.0
    %1052 = vmatpush1.msra.mxu0 0.0
    %1053 = vmatprep.subr.mxu0 0.0
    %1054 = vmatpush1.msra.mxu0 0.0
    %1055 = vmatprep.subr.mxu0 0.0
    %1056 = vmatpush1.msra.mxu0 0.0
    %1057 = vmatprep.subr.mxu0 0.0
    %1058 = vmatpush1.msra.mxu0 0.0
    %1059 = vmatprep.subr.mxu0 0.0
    %1060 = vmatpush1.msra.mxu0 0.0
    %1061 = vmatprep.subr.mxu0 0.0
    %1062 = vmatpush1.msra.mxu0 0.0
    %1063 = vmatprep.subr.mxu0 0.0
    %1064 = vmatpush1.msra.mxu0 0.0
    %1065 = vmatprep.subr.mxu0 0.0
    %1066 = vmatpush1.msra.mxu0 0.0
    %1067 = vmatprep.subr.mxu0 0.0
    %1068 = vmatpush1.msra.mxu0 0.0
    %1069 = vmatprep.subr.mxu0 0.0
    %1070 = vmatpush1.msra.mxu0 0.0
    %1071 = vmatprep.subr.mxu0 0.0
    %1072 = vmatpush1.msra.mxu0 0.0
    %1073 = vmatprep.subr.mxu0 0.0
    %1074 = vmatpush1.msra.mxu0 0.0
    %1075 = vmatprep.subr.mxu0 0.0
    %1076 = vmatpush1.msra.mxu0 0.0
    %1077 = vmatprep.subr.mxu0 0.0
    %1078 = vmatpush1.msra.mxu0 0.0
    %1079 = vmatprep.subr.mxu0 0.0
    %1080 = vmatpush1.msra.mxu0 0.0
    %1081 = vmatprep.subr.mxu0 0.0
    %1082 = vmatpush1.msra.mxu0 0.0
    %1083 = vmatprep.subr.mxu0 0.0
    %1084 = vmatpush1.msra.mxu0 0.0
    %1085 = vmatprep.subr.mxu0 0.0
    %1086 = vmatpush1.msra.mxu0 0.0
    %1087 = vmatprep.subr.mxu0 0.0
    %1088 = vmatpush1.msra.mxu0 0.0
    %1089 = vmatprep.subr.mxu0 0.0
    %1090 = vmatpush1.msra.mxu0 0.0
    %1091 = vmatprep.subr.mxu0 0.0
    %1092 = vmatpush1.msra.mxu0 0.0
    %1093 = vmatprep.mubr.f32.mxu0 0.0
    %1094 = vmatmul.mubr.f32.gmra.mrb[0].mxu0 %v1027
    %v1095 = vpop.f32.mrb[0].mxu0
    %v1096 = vadd.f32 0.0, %v1095
    %v1097 = vpop.f32.mrb[0].mxu0
    %1098 = vdwg.mxu0
    %v1099 = vadd.f32 %v1096, %v306
    %v1100 = vadd.f32 %v1096, %v301
    %1102 = vrot.lane.b32.xlu0 %v1100, 64
    %v1103 = vpop.permute.xlu0 %1102
    %v1105 = vsel %vm222, %v1099, %v1103
    %v1106 = vxor.u32 %v1105, 2147483648
    %v1107 = vmul.f32 %v1106, 1.442695
    %v1108 = vpow.pop %v1107
    %v1109 = vadd.f32 %v1108, 1.0
    %v1110 = vrcp.pop %v1109
    %v1111 = vmul.f32 1.0, %v1110
    %v1112 = vtanh.pop %v1105
    %v1113 = vmul.f32 %v1111, %v1014
    %1115 = vrot.lane.b32.xlu0 %v1112, 80
    %v1116 = vpop.permute.xlu0 %1115
    %v1118 = vmul.f32 %v1111, %v1116
    %1120 = vrot.lane.b32.xlu0 %v1118, 16
    %v1121 = vpop.permute.xlu0 %1120
    %v1123 = vadd.f32 %v1113, %v1121
    %v1124 = vtanh.pop %v1123
    %1126 = vrot.lane.b32.xlu0 %v1124, 16
    %v1127 = vpop.permute.xlu0 %1126
    %v1129 = vmul.f32 %v1111, %v1127
    %1131 = vrot.lane.b32.xlu0 %v1129, 96
    %v1132 = vpop.permute.xlu0 %1131
    %1134 = vst.msk [vmem:[#allocation2 + $0x7] sm:$0x1] %vm345, %v1132
    %1135 = vst.msk [vmem:[#allocation3 - $0x1] sm:$0x2] %vm347, %v1132
    %v1136 = vld [vmem:[#allocation2] sm:$0xff]
    %v1137 = vld [vmem:[%s7] sm:$0xff]
    %v1138 = vld [vmem:[%s7 + $0x8] sm:$0xff]
    %v1139 = vld [vmem:[#allocation3] sm:$0xff]
    %v1140 = vld [vmem:[%s8] sm:$0xff]
    %v1141 = vld [vmem:[%s8 + $0x8] sm:$0xff]
    %v1143 = vsel %vm144, %v1139, 0
    %1145 = vmatprep.subr.mxu0 0.0
    %1146 = vmatpush1.msra.mxu0 %v1140
    %1147 = vmatprep.subr.mxu0 0.0
    %1148 = vmatpush1.msra.mxu0 %v1141
    %1149 = vmatprep.subr.mxu0 0.0
    %1150 = vmatpush1.msra.mxu0 0.0
    %1151 = vmatprep.subr.mxu0 0.0
    %1152 = vmatpush1.msra.mxu0 0.0
    %1153 = vmatprep.subr.mxu0 0.0
    %1154 = vmatpush1.msra.mxu0 0.0
    %1155 = vmatprep.subr.mxu0 0.0
    %1156 = vmatpush1.msra.mxu0 0.0
    %1157 = vmatprep.subr.mxu0 0.0
    %1158 = vmatpush1.msra.mxu0 0.0
    %1159 = vmatprep.subr.mxu0 0.0
    %1160 = vmatpush1.msra.mxu0 0.0
    %1161 = vmatprep.subr.mxu0 0.0
    %1162 = vmatpush1.msra.mxu0 0.0
    %1163 = vmatprep.subr.mxu0 0.0
    %1164 = vmatpush1.msra.mxu0 0.0
    %1165 = vmatprep.subr.mxu0 0.0
    %1166 = vmatpush1.msra.mxu0 0.0
    %1167 = vmatprep.subr.mxu0 0.0
    %1168 = vmatpush1.msra.mxu0 0.0
    %1169 = vmatprep.subr.mxu0 0.0
    %1170 = vmatpush1.msra.mxu0 0.0
    %1171 = vmatprep.subr.mxu0 0.0
    %1172 = vmatpush1.msra.mxu0 0.0
    %1173 = vmatprep.subr.mxu0 0.0
    %1174 = vmatpush1.msra.mxu0 0.0
    %1175 = vmatprep.subr.mxu0 0.0
    %1176 = vmatpush1.msra.mxu0 0.0
    %1177 = vmatprep.subr.mxu0 0.0
    %1178 = vmatpush1.msra.mxu0 0.0
    %1179 = vmatprep.subr.mxu0 0.0
    %1180 = vmatpush1.msra.mxu0 0.0
    %1181 = vmatprep.subr.mxu0 0.0
    %1182 = vmatpush1.msra.mxu0 0.0
    %1183 = vmatprep.subr.mxu0 0.0
    %1184 = vmatpush1.msra.mxu0 0.0
    %1185 = vmatprep.subr.mxu0 0.0
    %1186 = vmatpush1.msra.mxu0 0.0
    %1187 = vmatprep.subr.mxu0 0.0
    %1188 = vmatpush1.msra.mxu0 0.0
    %1189 = vmatprep.subr.mxu0 0.0
    %1190 = vmatpush1.msra.mxu0 0.0
    %1191 = vmatprep.subr.mxu0 0.0
    %1192 = vmatpush1.msra.mxu0 0.0
    %1193 = vmatprep.subr.mxu0 0.0
    %1194 = vmatpush1.msra.mxu0 0.0
    %1195 = vmatprep.subr.mxu0 0.0
    %1196 = vmatpush1.msra.mxu0 0.0
    %1197 = vmatprep.subr.mxu0 0.0
    %1198 = vmatpush1.msra.mxu0 0.0
    %1199 = vmatprep.subr.mxu0 0.0
    %1200 = vmatpush1.msra.mxu0 0.0
    %1201 = vmatprep.subr.mxu0 0.0
    %1202 = vmatpush1.msra.mxu0 0.0
    %1203 = vmatprep.subr.mxu0 0.0
    %1204 = vmatpush1.msra.mxu0 0.0
    %1205 = vmatprep.subr.mxu0 0.0
    %1206 = vmatpush1.msra.mxu0 0.0
    %1207 = vmatprep.subr.mxu0 0.0
    %1208 = vmatpush1.msra.mxu0 0.0
    %1209 = vmatprep.mubr.f32.mxu0 0.0
    %1210 = vmatmul.mubr.f32.gmra.mrb[0].mxu0 %v1143
    %v1211 = vpop.f32.mrb[0].mxu0
    %v1212 = vadd.f32 0.0, %v1211
    %v1213 = vpop.f32.mrb[0].mxu0
    %1214 = vdwg.mxu0
    %v1216 = vsel %vm144, %v1136, 0
    %1218 = vmatprep.subr.mxu0 0.0
    %1219 = vmatpush1.msra.mxu0 %v1137
    %1220 = vmatprep.subr.mxu0 0.0
    %1221 = vmatpush1.msra.mxu0 %v1138
    %1222 = vmatprep.subr.mxu0 0.0
    %1223 = vmatpush1.msra.mxu0 0.0
    %1224 = vmatprep.subr.mxu0 0.0
    %1225 = vmatpush1.msra.mxu0 0.0
    %1226 = vmatprep.subr.mxu0 0.0
    %1227 = vmatpush1.msra.mxu0 0.0
    %1228 = vmatprep.subr.mxu0 0.0
    %1229 = vmatpush1.msra.mxu0 0.0
    %1230 = vmatprep.subr.mxu0 0.0
    %1231 = vmatpush1.msra.mxu0 0.0
    %1232 = vmatprep.subr.mxu0 0.0
    %1233 = vmatpush1.msra.mxu0 0.0
    %1234 = vmatprep.subr.mxu0 0.0
    %1235 = vmatpush1.msra.mxu0 0.0
    %1236 = vmatprep.subr.mxu0 0.0
    %1237 = vmatpush1.msra.mxu0 0.0
    %1238 = vmatprep.subr.mxu0 0.0
    %1239 = vmatpush1.msra.mxu0 0.0
    %1240 = vmatprep.subr.mxu0 0.0
    %1241 = vmatpush1.msra.mxu0 0.0
    %1242 = vmatprep.subr.mxu0 0.0
    %1243 = vmatpush1.msra.mxu0 0.0
    %1244 = vmatprep.subr.mxu0 0.0
    %1245 = vmatpush1.msra.mxu0 0.0
    %1246 = vmatprep.subr.mxu0 0.0
    %1247 = vmatpush1.msra.mxu0 0.0
    %1248 = vmatprep.subr.mxu0 0.0
    %1249 = vmatpush1.msra.mxu0 0.0
    %1250 = vmatprep.subr.mxu0 0.0
    %1251 = vmatpush1.msra.mxu0 0.0
    %1252 = vmatprep.subr.mxu0 0.0
    %1253 = vmatpush1.msra.mxu0 0.0
    %1254 = vmatprep.subr.mxu0 0.0
    %1255 = vmatpush1.msra.mxu0 0.0
    %1256 = vmatprep.subr.mxu0 0.0
    %1257 = vmatpush1.msra.mxu0 0.0
    %1258 = vmatprep.subr.mxu0 0.0
    %1259 = vmatpush1.msra.mxu0 0.0
    %1260 = vmatprep.subr.mxu0 0.0
    %1261 = vmatpush1.msra.mxu0 0.0
    %1262 = vmatprep.subr.mxu0 0.0
    %1263 = vmatpush1.msra.mxu0 0.0
    %1264 = vmatprep.subr.mxu0 0.0
    %1265 = vmatpush1.msra.mxu0 0.0
    %1266 = vmatprep.subr.mxu0 0.0
    %1267 = vmatpush1.msra.mxu0 0.0
    %1268 = vmatprep.subr.mxu0 0.0
    %1269 = vmatpush1.msra.mxu0 0.0
    %1270 = vmatprep.subr.mxu0 0.0
    %1271 = vmatpush1.msra.mxu0 0.0
    %1272 = vmatprep.subr.mxu0 0.0
    %1273 = vmatpush1.msra.mxu0 0.0
    %1274 = vmatprep.subr.mxu0 0.0
    %1275 = vmatpush1.msra.mxu0 0.0
    %1276 = vmatprep.subr.mxu0 0.0
    %1277 = vmatpush1.msra.mxu0 0.0
    %1278 = vmatprep.subr.mxu0 0.0
    %1279 = vmatpush1.msra.mxu0 0.0
    %1280 = vmatprep.subr.mxu0 0.0
    %1281 = vmatpush1.msra.mxu0 0.0
    %1282 = vmatprep.mubr.f32.mxu0 0.0
    %1283 = vmatmul.mubr.f32.gmra.mrb[0].mxu0 %v1216
    %v1284 = vpop.f32.mrb[0].mxu0
    %v1285 = vadd.f32 %v1212, %v1284
    %v1286 = vpop.f32.mrb[0].mxu0
    %1287 = vdwg.mxu0
    %v1288 = vld [vmem:[%s9] sm:$0x1]
    %v1290 = vlaneseq
    %v1291 = vshrl.u32 %v1290, 7
    %v1292 = vsub.s32 0, %v1291
    %v1293 = vrot.slane %v1288, %v1292
    %v1295 = vadd.f32 %v1285, %v1293
    %vm1296 = vcmask 39936
    %1297 = vst.msk [vmem:[#allocation4] sm:$0xff] %vm1296, %v1295
    %v1298 = vld [vmem:[%s10] sm:$0x1f]
    %v1299 = vld [vmem:[%s11] sm:$0x1f]
    %vm1300 = vcmp.eq.s32.totalorder %v221, %v47
    %v1301 = vlaneseq
    %v1302 = vshrl.u32 %v1301, 7
    %v1303 = vsub.s32 1, %v1302
    %v1304 = vrot.slane %v1295, %v1303
    %v1305 = vsel %vm1300, %v1304, 0.0
    %vm1306 = vcmask 36864
    %v1307 = vsel %vm1306, %v1305, 0.0
    %1308 = vadd.xlane.f32.xlu0 %v1307
    %v1309 = vpop.xlane.xlu0 %1308
    %v1310 = vlaneseq
    %v1311 = vshrl.u32 %v1310, 7
    %v1312 = vsub.s32 3, %v1311
    %v1313 = vrot.slane %v1295, %v1312
    %v1314 = vsel %vm1300, %v1313, 0.0
    %v1315 = vsel %vm1306, %v1314, 0.0
    %1316 = vadd.xlane.f32.xlu0 %v1315
    %v1317 = vpop.xlane.xlu0 %1316
    %v1318 = vlaneseq
    %v1319 = vshrl.u32 %v1318, 7
    %v1320 = vsub.s32 5, %v1319
    %v1321 = vrot.slane %v1295, %v1320
    %v1322 = vsel %vm1300, %v1321, 0.0
    %v1323 = vsel %vm1306, %v1322, 0.0
    %1324 = vadd.xlane.f32.xlu0 %v1323
    %v1325 = vpop.xlane.xlu0 %1324
    %v1326 = vlaneseq
    %v1327 = vshrl.u32 %v1326, 7
    %v1328 = vsub.s32 7, %v1327
    %v1329 = vrot.slane %v1295, %v1328
    %v1330 = vsel %vm1300, %v1329, 0.0
    %v1331 = vsel %vm1306, %v1330, 0.0
    %1332 = vadd.xlane.f32.xlu0 %v1331
    %v1333 = vpop.xlane.xlu0 %1332
    %vm1334 = vcmp.eq.s32.totalorder %v221, 3
    %v1335 = vsel %vm1334, 0.0, -10000.0
    %v1336 = vadd.f32 %v1299, %v1335
    %v1337 = vsel %vm1306, %v1336, -inf
    %v1338 = vrot.slane %v1337, 4
    %v1339 = vmax.f32 %v1337, %v1338
    %v1340 = vrot.slane %v1339, 2
    %v1341 = vmax.f32 %v1339, %v1340
    %v1342 = vrot.slane %v1341, 1
    %v1343 = vmax.f32 %v1341, %v1342
    %v1344 = vadd.f32 %v1343, %v1295
    %v1345 = vlaneseq
    %v1346 = vshrl.u32 %v1345, 7
    %v1347 = vsub.s32 0, %v1346
    %v1348 = vrot.slane %v1344, %v1347
    %v1349 = vadd.f32 %v1298, %v1348
    %v1350 = vsel %vm1306, %v1349, -inf
    %1351 = vmax.xlane.f32.xlu0 %v1350
    %v1352 = vpop.xlane.xlu0 %1351
    %vm1353 = vcmp.eq.f32.partialorder %v1349, %v1352
    %v1354 = vsel %vm1353, %v47, 5
    %v1355 = vsel %vm1306, %v1354, 2147483647
    %v1356 = vand.u32 %v1355, 65535
    %v1357 = vshra.s32 %v1355, 16
    %v1358 = vcvt.s32.f32 %v1356
    %v1359 = vcvt.s32.f32 %v1357
    %1360 = vmin.xlane.f32.xlu0 %v1359
    %v1361 = vpop.xlane.xlu0 %1360
    %vm1362 = vcmp.eq.f32.partialorder %v1359, %v1361
    %v1363 = vsel %vm1362, %v1358, inf
    %1364 = vmin.xlane.f32.xlu0 %v1363
    %v1365 = vpop.xlane.xlu0 %1364
    %v1366 = vcvt.f32.s32 %v1365
    %v1367 = vcvt.f32.s32 %v1361
    %v1368 = vshll.u32 %v1367, 16
    %v1369 = vadd.s32 %v1368, %v1366
    %v1370 = vadd.f32 %v1352, %v1309
    %v1371 = vadd.f32 %v1299, %v1370
    %v1372 = vsel %vm1306, %v1371, -inf
    %v1373 = vrot.slane %v1372, 4
    %v1374 = vmax.f32 %v1372, %v1373
    %v1375 = vrot.slane %v1374, 2
    %v1376 = vmax.f32 %v1374, %v1375
    %v1377 = vrot.slane %v1376, 1
    %v1378 = vmax.f32 %v1376, %v1377
    %vm1379 = vcmp.eq.f32.partialorder %v1371, %v1378
    %v1380 = vsel %vm1379, %v221, 5
    %v1381 = vsel %vm1306, %v1380, 2147483647
    %v1382 = vrot.slane %v1381, 4
    %vm1383 = vcmp.lt.s32.totalorder %v1381, %v1382
    %v1384 = vsel %vm1383, %v1381, %v1382
    %v1385 = vrot.slane %v1384, 2
    %vm1386 = vcmp.lt.s32.totalorder %v1384, %v1385
    %v1387 = vsel %vm1386, %v1384, %v1385
    %v1388 = vrot.slane %v1387, 1
    %vm1389 = vcmp.lt.s32.totalorder %v1387, %v1388
    %v1390 = vsel %vm1389, %v1387, %v1388
    %v1391 = vadd.f32 %v1378, %v1295
    %v1392 = vlaneseq
    %v1393 = vshrl.u32 %v1392, 7
    %v1394 = vsub.s32 2, %v1393
    %v1395 = vrot.slane %v1391, %v1394
    %v1396 = vadd.f32 %v1298, %v1395
    %v1397 = vsel %vm1306, %v1396, -inf
    %1398 = vmax.xlane.f32.xlu0 %v1397
    %v1399 = vpop.xlane.xlu0 %1398
    %vm1400 = vcmp.eq.f32.partialorder %v1396, %v1399
    %v1401 = vsel %vm1400, %v47, 5
    %v1402 = vsel %vm1306, %v1401, 2147483647
    %v1403 = vand.u32 %v1402, 65535
    %v1404 = vshra.s32 %v1402, 16
    %v1405 = vcvt.s32.f32 %v1403
    %v1406 = vcvt.s32.f32 %v1404
    %1407 = vmin.xlane.f32.xlu0 %v1406
    %v1408 = vpop.xlane.xlu0 %1407
    %vm1409 = vcmp.eq.f32.partialorder %v1406, %v1408
    %v1410 = vsel %vm1409, %v1405, inf
    %1411 = vmin.xlane.f32.xlu0 %v1410
    %v1412 = vpop.xlane.xlu0 %1411
    %v1413 = vcvt.f32.s32 %v1412
    %v1414 = vcvt.f32.s32 %v1408
    %v1415 = vshll.u32 %v1414, 16
    %v1416 = vadd.s32 %v1415, %v1413
    %v1417 = vadd.f32 %v1399, %v1317
    %v1418 = vadd.f32 %v1299, %v1417
    %v1419 = vsel %vm1306, %v1418, -inf
    %v1420 = vrot.slane %v1419, 4
    %v1421 = vmax.f32 %v1419, %v1420
    %v1422 = vrot.slane %v1421, 2
    %v1423 = vmax.f32 %v1421, %v1422
    %v1424 = vrot.slane %v1423, 1
    %v1425 = vmax.f32 %v1423, %v1424
    %vm1426 = vcmp.eq.f32.partialorder %v1418, %v1425
    %v1427 = vsel %vm1426, %v221, 5
    %v1428 = vsel %vm1306, %v1427, 2147483647
    %v1429 = vrot.slane %v1428, 4
    %vm1430 = vcmp.lt.s32.totalorder %v1428, %v1429
    %v1431 = vsel %vm1430, %v1428, %v1429
    %v1432 = vrot.slane %v1431, 2
    %vm1433 = vcmp.lt.s32.totalorder %v1431, %v1432
    %v1434 = vsel %vm1433, %v1431, %v1432
    %v1435 = vrot.slane %v1434, 1
    %vm1436 = vcmp.lt.s32.totalorder %v1434, %v1435
    %v1437 = vsel %vm1436, %v1434, %v1435
    %v1438 = vadd.f32 %v1425, %v1295
    %v1439 = vlaneseq
    %v1440 = vshrl.u32 %v1439, 7
    %v1441 = vsub.s32 4, %v1440
    %v1442 = vrot.slane %v1438, %v1441
    %v1443 = vadd.f32 %v1298, %v1442
    %v1444 = vsel %vm1306, %v1443, -inf
    %1445 = vmax.xlane.f32.xlu0 %v1444
    %v1446 = vpop.xlane.xlu0 %1445
    %vm1447 = vcmp.eq.f32.partialorder %v1443, %v1446
    %v1448 = vsel %vm1447, %v47, 5
    %v1449 = vsel %vm1306, %v1448, 2147483647
    %v1450 = vand.u32 %v1449, 65535
    %v1451 = vshra.s32 %v1449, 16
    %v1452 = vcvt.s32.f32 %v1450
    %v1453 = vcvt.s32.f32 %v1451
    %1454 = vmin.xlane.f32.xlu0 %v1453
    %v1455 = vpop.xlane.xlu0 %1454
    %vm1456 = vcmp.eq.f32.partialorder %v1453, %v1455
    %v1457 = vsel %vm1456, %v1452, inf
    %1458 = vmin.xlane.f32.xlu0 %v1457
    %v1459 = vpop.xlane.xlu0 %1458
    %v1460 = vcvt.f32.s32 %v1459
    %v1461 = vcvt.f32.s32 %v1455
    %v1462 = vshll.u32 %v1461, 16
    %v1463 = vadd.s32 %v1462, %v1460
    %v1464 = vadd.f32 %v1446, %v1325
    %v1465 = vadd.f32 %v1299, %v1464
    %v1466 = vsel %vm1306, %v1465, -inf
    %v1467 = vrot.slane %v1466, 4
    %v1468 = vmax.f32 %v1466, %v1467
    %v1469 = vrot.slane %v1468, 2
    %v1470 = vmax.f32 %v1468, %v1469
    %v1471 = vrot.slane %v1470, 1
    %v1472 = vmax.f32 %v1470, %v1471
    %vm1473 = vcmp.eq.f32.partialorder %v1465, %v1472
    %v1474 = vsel %vm1473, %v221, 5
    %v1475 = vsel %vm1306, %v1474, 2147483647
    %v1476 = vrot.slane %v1475, 4
    %vm1477 = vcmp.lt.s32.totalorder %v1475, %v1476
    %v1478 = vsel %vm1477, %v1475, %v1476
    %v1479 = vrot.slane %v1478, 2
    %vm1480 = vcmp.lt.s32.totalorder %v1478, %v1479
    %v1481 = vsel %vm1480, %v1478, %v1479
    %v1482 = vrot.slane %v1481, 1
    %vm1483 = vcmp.lt.s32.totalorder %v1481, %v1482
    %v1484 = vsel %vm1483, %v1481, %v1482
    %v1485 = vadd.f32 %v1472, %v1295
    %v1486 = vlaneseq
    %v1487 = vshrl.u32 %v1486, 7
    %v1488 = vsub.s32 6, %v1487
    %v1489 = vrot.slane %v1485, %v1488
    %v1490 = vadd.f32 %v1298, %v1489
    %v1491 = vsel %vm1306, %v1490, -inf
    %1492 = vmax.xlane.f32.xlu0 %v1491
    %v1493 = vpop.xlane.xlu0 %1492
    %vm1494 = vcmp.eq.f32.partialorder %v1490, %v1493
    %v1495 = vsel %vm1494, %v47, 5
    %v1496 = vsel %vm1306, %v1495, 2147483647
    %v1497 = vand.u32 %v1496, 65535
    %v1498 = vshra.s32 %v1496, 16
    %v1499 = vcvt.s32.f32 %v1497
    %v1500 = vcvt.s32.f32 %v1498
    %1501 = vmin.xlane.f32.xlu0 %v1500
    %v1502 = vpop.xlane.xlu0 %1501
    %vm1503 = vcmp.eq.f32.partialorder %v1500, %v1502
    %v1504 = vsel %vm1503, %v1499, inf
    %1505 = vmin.xlane.f32.xlu0 %v1504
    %v1506 = vpop.xlane.xlu0 %1505
    %v1507 = vcvt.f32.s32 %v1506
    %v1508 = vcvt.f32.s32 %v1502
    %v1509 = vshll.u32 %v1508, 16
    %v1510 = vadd.s32 %v1509, %v1507
    %v1511 = vadd.f32 %v1493, %v1333
    %v1512 = vadd.f32 %v1511, %v1299
    %vm1513 = vcmask 36896
    %v1514 = vsel %vm1513, %v1512, -inf
    %v1515 = vrot.slane %v1514, 4
    %v1516 = vmax.f32 %v1514, %v1515
    %v1517 = vrot.slane %v1516, 2
    %v1518 = vmax.f32 %v1516, %v1517
    %v1519 = vrot.slane %v1518, 1
    %v1520 = vmax.f32 %v1518, %v1519
    %vm1521 = vcmp.eq.f32.partialorder %v1512, %v1520
    %v1522 = vsel %vm1521, %v221, 5
    %v1523 = vsel %vm1513, %v1522, 2147483647
    %v1524 = vrot.slane %v1523, 4
    %vm1525 = vcmp.lt.s32.totalorder %v1523, %v1524
    %v1526 = vsel %vm1525, %v1523, %v1524
    %v1527 = vrot.slane %v1526, 2
    %vm1528 = vcmp.lt.s32.totalorder %v1526, %v1527
    %v1529 = vsel %vm1528, %v1526, %v1527
    %v1530 = vrot.slane %v1529, 1
    %vm1531 = vcmp.lt.s32.totalorder %v1529, %v1530
    %v1532 = vsel %vm1531, %v1529, %v1530
    %vm1533 = vcmp.eq.s32.totalorder %v47, 7
    %1534 = vset.pattern.permute.xlu0 4
    %1535 = vperm.xlu0 %1534, %v1532
    %v1536 = vpop.permute.xlu0 %1535
    %v1537 = vsel %vm1533, %v1536, 0
    %vm1538 = vcmp.eq.s32.totalorder %v221, %v1532
    %v1539 = vsel %vm1538, %v1510, 0
    %v1540 = vsel %vm1513, %v1539, 0
    %v1541 = vrot.slane %v1540, 4
    %v1542 = vadd.s32 %v1540, %v1541
    %v1543 = vrot.slane %v1542, 2
    %v1544 = vadd.s32 %v1542, %v1543
    %v1545 = vrot.slane %v1544, 1
    %v1546 = vadd.s32 %v1544, %v1545
    %vm1547 = vcmp.eq.s32.totalorder %v47, 6
    %1548 = vset.pattern.permute.xlu0 4
    %1549 = vperm.xlu0 %1548, %v1546
    %v1550 = vpop.permute.xlu0 %1549
    %v1551 = vsel %vm1547, %v1550, %v1537
    %vm1552 = vcmp.eq.s32.totalorder %v47, %v1550
    %v1553 = vsel %vm1552, %v1484, 0
    %v1554 = vsel %vm1296, %v1553, 0
    %v1555 = vand.u32 %v1554, 65535
    %v1556 = vshrl.u32 %v1554, 16
    %v1557 = vcvt.s32.f32 %v1555
    %v1558 = vcvt.s32.f32 %v1556
    %1559 = vadd.xlane.f32.xlu0 %v1557
    %v1560 = vpop.xlane.xlu0 %1559
    %1561 = vadd.xlane.f32.xlu0 %v1558
    %v1562 = vpop.xlane.xlu0 %1561
    %v1563 = vcvt.f32.s32 %v1560
    %v1564 = vcvt.f32.s32 %v1562
    %v1565 = vshll.u32 %v1564, 16
    %v1566 = vadd.s32 %v1565, %v1563
    %vm1567 = vcmp.eq.s32.totalorder %v47, 5
    %v1568 = vsel %vm1567, %v1566, %v1551
    %vm1569 = vcmp.eq.s32.totalorder %v221, %v1566
    %v1570 = vsel %vm1569, %v1463, 0
    %vm1571 = vcmask 1044480
    %v1572 = vsel %vm1571, %v1570, 0
    %v1573 = vrot.slane %v1572, 4
    %v1574 = vadd.s32 %v1572, %v1573
    %v1575 = vrot.slane %v1574, 2
    %v1576 = vadd.s32 %v1574, %v1575
    %v1577 = vrot.slane %v1576, 1
    %v1578 = vadd.s32 %v1576, %v1577
    %vm1579 = vcmp.eq.s32.totalorder %v47, 4
    %v1580 = vsel %vm1579, %v1578, %v1568
    %vm1581 = vcmp.eq.s32.totalorder %v47, %v1578
    %v1582 = vsel %vm1581, %v1437, 0
    %v1583 = vsel %vm1296, %v1582, 0
    %v1584 = vand.u32 %v1583, 65535
    %v1585 = vshrl.u32 %v1583, 16
    %v1586 = vcvt.s32.f32 %v1584
    %v1587 = vcvt.s32.f32 %v1585
    %1588 = vadd.xlane.f32.xlu0 %v1586
    %v1589 = vpop.xlane.xlu0 %1588
    %1590 = vadd.xlane.f32.xlu0 %v1587
    %v1591 = vpop.xlane.xlu0 %1590
    %v1592 = vcvt.f32.s32 %v1589
    %v1593 = vcvt.f32.s32 %v1591
    %v1594 = vshll.u32 %v1593, 16
    %v1595 = vadd.s32 %v1594, %v1592
    %vm1596 = vcmp.eq.s32.totalorder %v47, 3
    %v1597 = vsel %vm1596, %v1595, %v1580
    %vm1598 = vcmp.eq.s32.totalorder %v221, %v1595
    %v1599 = vsel %vm1598, %v1416, 0
    %v1600 = vsel %vm1571, %v1599, 0
    %v1601 = vrot.slane %v1600, 4
    %v1602 = vadd.s32 %v1600, %v1601
    %v1603 = vrot.slane %v1602, 2
    %v1604 = vadd.s32 %v1602, %v1603
    %v1605 = vrot.slane %v1604, 1
    %v1606 = vadd.s32 %v1604, %v1605
    %vm1607 = vcmp.eq.s32.totalorder %v47, 2
    %v1608 = vsel %vm1607, %v1606, %v1597
    %vm1609 = vcmp.eq.s32.totalorder %v47, %v1606
    %v1610 = vsel %vm1609, %v1390, 0
    %v1611 = vsel %vm1296, %v1610, 0
    %v1612 = vand.u32 %v1611, 65535
    %v1613 = vshrl.u32 %v1611, 16
    %v1614 = vcvt.s32.f32 %v1612
    %v1615 = vcvt.s32.f32 %v1613
    %1616 = vadd.xlane.f32.xlu0 %v1614
    %v1617 = vpop.xlane.xlu0 %1616
    %1618 = vadd.xlane.f32.xlu0 %v1615
    %v1619 = vpop.xlane.xlu0 %1618
    %v1620 = vcvt.f32.s32 %v1617
    %v1621 = vcvt.f32.s32 %v1619
    %v1622 = vshll.u32 %v1621, 16
    %v1623 = vadd.s32 %v1622, %v1620
    %vm1624 = vcmp.eq.s32.totalorder %v47, 1
    %v1625 = vsel %vm1624, %v1623, %v1608
    %vm1626 = vcmp.eq.s32.totalorder %v221, %v1623
    %v1627 = vsel %vm1626, %v1369, 0
    %v1628 = vsel %vm1571, %v1627, 0
    %v1629 = vrot.slane %v1628, 4
    %v1630 = vadd.s32 %v1628, %v1629
    %v1631 = vrot.slane %v1630, 2
    %v1632 = vadd.s32 %v1630, %v1631
    %v1633 = vrot.slane %v1632, 1
    %v1634 = vadd.s32 %v1632, %v1633
    %vm1635 = vcmp.eq.s32.totalorder %v47, 0
    %v1636 = vsel %vm1635, %v1634, %v1625
    %vm1637 = vcmask 57344
    %1638 = vst.msk [vmem:[#allocation6] sm:$0x1] %vm1637, %v1636
    // Predicated region
    $region50: #{bilstm_crf_forward.1} parent=1 // pred_check
      _
    $region51: #{bilstm_crf_forward.1} parent=1 // pred_check_branch
      %1640 = sbr.rel (0) target = $region53
    $region52: #{bilstm_crf_forward.1} parent=1 // pred_region
      %s1642 = ssub.s32 128, 128
      %1643 = vsyncadd [#allocation5], %s1642
      %s1645 = sshll.u32 [#allocation4], 4
      %s1646 = int_to_ptr.vmem [resolvable:$true] %s1645
      %1648 = dma.vmem_to_hbm [thread:$0]  %s1646, 128, %s12, [#allocation5]
    $region53: #{bilstm_crf_forward.1} parent=1 // pred_fallthru
      _
    // Predicated region
    $region54: #{bilstm_crf_forward.1} parent=1 // pred_check
      _
    $region55: #{bilstm_crf_forward.1} parent=1 // pred_check_branch
      %1650 = sbr.rel (0) target = $region57
    $region56: #{bilstm_crf_forward.1} parent=1 // pred_region
      %s1652 = ssub.s32 16, 16
      %1653 = vsyncadd [#allocation7], %s1652
      %s1655 = sshll.u32 [#allocation6], 4
      %s1656 = int_to_ptr.vmem [resolvable:$true] %s1655
      %1658 = dma.vmem_to_hbm [thread:$0]  %s1656, 16, %s13, [#allocation7]
    $region57: #{bilstm_crf_forward.1} parent=1 // pred_fallthru
      _
    // Predicated region
    $region58: #{bilstm_crf_forward.1} parent=1 // pred_check
      _
    $region59: #{bilstm_crf_forward.1} parent=1 // pred_check_branch
      %1660 = sbr.rel (0) target = $region61
    $region60: #{bilstm_crf_forward.1} parent=1 // pred_region
      %1661 = dma.done [#allocation5], 128
    $region61: #{bilstm_crf_forward.1} parent=1 // pred_fallthru
      _
    // Predicated region
    $region62: #{bilstm_crf_forward.1} parent=1 // pred_check
      _
    $region63: #{bilstm_crf_forward.1} parent=1 // pred_check_branch
      %1663 = sbr.rel (0) target = $region65
    $region64: #{bilstm_crf_forward.1} parent=1 // pred_region
      %1664 = dma.done [#allocation7], 16
    $region65: #{bilstm_crf_forward.1} parent=1 // pred_fallthru
      _
    %1665 = vsyncpa [#allocation5], 1
    %1666 = vsyncpa [#allocation7], 1

</llo_original>
